<compile_context>
chip_gen: v7x
topology: tpu7x:2x2x1
jax: 0.10.0
libtpu: 0.0.40
codegen_flags: <defaults>
</compile_context>

<pallas_src>
import jax
import jax.numpy as jnp
from jax.experimental import pallas as pl
from jax.experimental.pallas import tpu as pltpu

# ----------------- scaled-down synthetic Model2 dimensions -------------------
B = 2          # batch
C_IN = 3       # image channels
IMG = 16       # spatial size (input img is [B, 3, 16, 16] NCHW)
C_ENC = 128    # encoder pooled feature dim (stands in for resnet18's 512)
H = 128        # hidden size               (stands in for 512)
V = 128        # vocab size
T = 8          # TEXT_MAX_LEN (scaled down from 151)
TM1 = T - 1
P = IMG * IMG  # spatial positions per image
K = 9 * C_IN   # im2col patch width (3x3 conv) = 27
K_PAD = 32     # padded contraction dim (multiple of 8, lane-friendlier)
START_TOK = 1  # synthetic <SOS> token id


# --------------------------------- kernel ------------------------------------
def model2_kernel(patches_ref, convw_ref, convb_ref,
                  fprojw_ref, fprojb_ref,
                  wfused_ref, outw_ref, outb_ref, onehot0_ref,
                  logits_ref, tokens_ref):
    """Fused encoder (conv-as-matmul + GAP + proj) + greedy GRU decode."""
    # ---------------- encoder ----------------
    # patches: [B*P, K_PAD] bf16, convw: [K_PAD, C_ENC] bf16, convb: [1, C_ENC] f32
    y = jnp.dot(patches_ref[...], convw_ref[...],
                preferred_element_type=jnp.float32) + convb_ref[...]
    y = jnp.maximum(y, 0.0)                                   # ReLU (f32, VPU)
    # Global average pool on the VPU/XLU (per-batch sublane reduce); avoids
    # pushing the [B*P, C_ENC] activation through the MXU as weight tiles.
    pooled = jnp.sum(y.reshape(B, P, C_ENC), axis=1) * (1.0 / P)   # [B, C_ENC]
    feat = (jnp.dot(pooled.astype(jnp.bfloat16), fprojw_ref[...],
                    preferred_element_type=jnp.float32)
            + fprojb_ref[...])                                 # [B, H] f32

    # ---------------- hoisted decode-loop invariants ----------------
    wfused = wfused_ref[...]                         # [V+H, 4H] bf16 (all biases folded)
    outw = outw_ref[...]                             # [H, V]  bf16
    outb = jnp.broadcast_to(outb_ref[...], (B, V))   # f32, broadcast once
    iota_t = jax.lax.broadcasted_iota(jnp.int32, (B, T), 1)

    h = feat                                         # [B, H] f32 GRU state
    onehot = onehot0_ref[...]                        # [B, V] bf16 (<SOS> one-hot)
    tokens = jnp.where(iota_t == 0, jnp.int32(START_TOK), jnp.int32(0))

    # Fully unrolled greedy decode (argmax feedback is inherently sequential).
    for t in range(TM1):
        # Single fused gate matmul: [onehot | h] @ [gate_tbl-stack | Whh-stack]
        xcat = jnp.concatenate([onehot, h.astype(jnp.bfloat16)], axis=-1)  # [B, V+H]
        g = jnp.dot(xcat, wfused, preferred_element_type=jnp.float32)      # [B, 4H]

        # PyTorch nn.GRU gate math (r, z, n ordering); biases already inside g.
        rz = jax.nn.sigmoid(g[:, 0:2 * H])                    # one sigmoid for r and z
        r = rz[:, 0:H]
        z = rz[:, H:2 * H]
        n = jnp.tanh(g[:, 2 * H:3 * H] + r * g[:, 3 * H:4 * H])
        h = (1.0 - z) * n + z * h

        logits = (jnp.dot(h.astype(jnp.bfloat16), outw,
                          preferred_element_type=jnp.float32) + outb)      # [B, V]
        logits_ref[t] = logits                      # VMEM store; HBM write once

        # Next-step one-hot via max-equality (short VPU/XLU chain on the serial
        # path). Exact ties would yield a multi-hot row (prob ~0 here).
        onehot = (logits == jnp.max(logits, axis=-1, keepdims=True)
                  ).astype(jnp.bfloat16)
        # argmax only feeds the token trace -> off the forward critical path.
        top = jnp.argmax(logits, axis=-1).astype(jnp.int32)                # [B]
        tokens = jnp.where(iota_t == (t + 1), top[:, None], tokens)

    tokens_ref[...] = tokens                         # [B, T] int32, single store


# --------------------------------- wrappers ----------------------------------
def _im2col_3x3(x_nhwc):
    """Extract 3x3 (pad=1, stride=1) patches -> [B, H*W, 9*C_in] (glue)."""
    b, h, w, c = x_nhwc.shape
    xp = jnp.pad(x_nhwc, ((0, 0), (1, 1), (1, 1), (0, 0)))
    cols = [xp[:, dh:dh + h, dw:dw + w, :] for dh in range(3) for dw in range(3)]
    patches = jnp.stack(cols, axis=3)                # [B, H, W, 9, C]
    return patches.reshape(b, h * w, 9 * c)


def _build_fused_gru_weight(params):
    """[V+H, 4H] bf16 fused decode weight with all GRU biases folded in.

    Columns: [ r,z fused (2H) | gi_n (H) | gh_n (H) ]
    Rows 0:V   (one-hot side): embed@Wih_rz + b_ih_rz + b_hh_rz | embed@Wih_n + b_in | b_hn
    Rows V:V+H (hidden  side): Whh_rz                            | 0                  | Whh_n
    Valid because every one-hot row sums to exactly 1.
    """
    wih, whh = params['gru_wih'], params['gru_whh']          # [H, 3H]
    bih, bhh = params['gru_bih'], params['gru_bhh']          # [1, 3H]
    gi_tbl = params['embed'] @ wih + bih                     # [V, 3H]
    top_rows = jnp.concatenate(
        [gi_tbl[:, 0:2 * H] + bhh[:, 0:2 * H],               # r,z (both biases)
         gi_tbl[:, 2 * H:3 * H],                             # gi_n (+ b_in)
         jnp.broadcast_to(bhh[:, 2 * H:3 * H], (V, H))],     # b_hn via one-hot
        axis=1)                                              # [V, 4H]
    bot_rows = jnp.concatenate(
        [whh[:, 0:2 * H],
         jnp.zeros((H, H), jnp.float32),
         whh[:, 2 * H:3 * H]],
        axis=1)                                              # [H, 4H]
    return jnp.concatenate([top_rows, bot_rows], axis=0).astype(jnp.bfloat16)


def model2_forward(img, params):
    """Inference path (captions=None => no teacher forcing), decoder='gru'."""
    # ---- glue / precompute in plain JAX (outside the kernel) ----
    x = jnp.transpose(img, (0, 2, 3, 1))                         # NCHW -> NHWC
    patches = _im2col_3x3(x).reshape(B * P, K)
    patches = jnp.pad(patches, ((0, 0), (0, K_PAD - K))).astype(jnp.bfloat16)
    convw = jnp.pad(params['conv_w'].reshape(K, C_ENC),
                    ((0, K_PAD - K), (0, 0))).astype(jnp.bfloat16)
    wfused = _build_fused_gru_weight(params)                     # [V+H, 4H] bf16
    onehot0 = (jax.lax.broadcasted_iota(jnp.int32, (B, V), 1)
               == START_TOK).astype(jnp.bfloat16)                # [B, V]

    logits, tokens = pl.pallas_call(
        model2_kernel,
        out_shape=(jax.ShapeDtypeStruct((TM1, B, V), jnp.float32),
                   jax.ShapeDtypeStruct((B, T), jnp.int32)),
        # Right-sized: total resident footprint is well under 1 MiB.
        compiler_params=pltpu.CompilerParams(vmem_limit_bytes=4 * 1024 * 1024),
    )(patches, convw, params['conv_b'],
      params['fproj_w'].astype(jnp.bfloat16), params['fproj_b'],
      wfused, params['out_w'].astype(jnp.bfloat16), params['out_b'], onehot0)

    outputs = jnp.transpose(logits, (1, 2, 0))       # [B, V, T-1] (permute(0,2,1))
    return outputs, tokens


def init_params(key):
    ks = jax.random.split(key, 11)
    s = 0.05
    return {
        'conv_w':  jax.random.normal(ks[0], (3, 3, C_IN, C_ENC), jnp.float32) * s,
        'conv_b':  jax.random.normal(ks[1], (1, C_ENC), jnp.float32) * s,
        'fproj_w': jax.random.normal(ks[2], (C_ENC, H), jnp.float32) * s,
        'fproj_b': jax.random.normal(ks[3], (1, H), jnp.float32) * s,
        'gru_wih': jax.random.normal(ks[4], (H, 3 * H), jnp.float32) * s,
        'gru_whh': jax.random.normal(ks[5], (H, 3 * H), jnp.float32) * s,
        'gru_bih': jax.random.normal(ks[6], (1, 3 * H), jnp.float32) * s,
        'gru_bhh': jax.random.normal(ks[7], (1, 3 * H), jnp.float32) * s,
        'out_w':   jax.random.normal(ks[8], (H, V), jnp.float32) * s,
        'out_b':   jax.random.normal(ks[9], (1, V), jnp.float32) * s,
        'embed':   jax.random.normal(ks[10], (V, H), jnp.float32) * s,
    }


if __name__ == "__main__":
    key = jax.random.PRNGKey(0)
    pkey, ikey = jax.random.split(key)
    params = init_params(pkey)
    img = jax.random.normal(ikey, (B, C_IN, IMG, IMG), jnp.float32)  # NCHW like torch

    outputs, tokens = jax.jit(model2_forward)(img, params)
    jax.block_until_ready((outputs, tokens))

    assert outputs.shape == (B, V, T - 1)
    assert tokens.shape == (B, T)
    assert int(tokens[0, 0]) == START_TOK
    print("KERNEL_OK")
</pallas_src>

<mosaic_0001>
module attributes {stable_mosaic.version = 11 : i64} {
  func.func @model2_kernel(%arg0: memref<512x32xbf16, #tpu.memory_space<vmem>>, %arg1: memref<32x128xbf16, #tpu.memory_space<vmem>>, %arg2: memref<1x128xf32, #tpu.memory_space<vmem>>, %arg3: memref<128x128xbf16, #tpu.memory_space<vmem>>, %arg4: memref<1x128xf32, #tpu.memory_space<vmem>>, %arg5: memref<256x512xbf16, #tpu.memory_space<vmem>>, %arg6: memref<128x128xbf16, #tpu.memory_space<vmem>>, %arg7: memref<1x128xf32, #tpu.memory_space<vmem>>, %arg8: memref<2x128xbf16, #tpu.memory_space<vmem>>, %arg9: memref<7x2x128xf32, #tpu.memory_space<vmem>>, %arg10: memref<2x8xi32, #tpu.memory_space<vmem>>) attributes {dimension_semantics = [], scalar_prefetch = 0 : i64, scratch_operands = 0 : i64, tpu.core_type = #tpu.core_type<tc>} {
    %c0 = arith.constant 0 : index
    %c0_0 = arith.constant 0 : index
    %0 = vector.load %arg0[%c0, %c0_0] : memref<512x32xbf16, #tpu.memory_space<vmem>>, vector<512x32xbf16>
    %c0_1 = arith.constant 0 : index
    %c0_2 = arith.constant 0 : index
    %1 = vector.load %arg1[%c0_1, %c0_2] : memref<32x128xbf16, #tpu.memory_space<vmem>>, vector<32x128xbf16>
    %cst = arith.constant dense<0.000000e+00> : vector<512x128xf32>
    %2 = tpu.matmul %0, %1, %cst {dimension_numbers = #tpu.dot_dimension_numbers<[1], [0], [0], [1], [0, 0, 1, 1], [], []>} : vector<512x32xbf16>, vector<32x128xbf16>, vector<512x128xf32> -> vector<512x128xf32>
    %c0_3 = arith.constant 0 : index
    %c0_4 = arith.constant 0 : index
    %3 = vector.load %arg2[%c0_3, %c0_4] : memref<1x128xf32, #tpu.memory_space<vmem>>, vector<1x128xf32>
    %4 = vector.broadcast %3 : vector<1x128xf32> to vector<512x128xf32>
    %5 = arith.addf %2, %4 : vector<512x128xf32>
    %cst_5 = arith.constant 0.000000e+00 : f32
    %6 = vector.broadcast %cst_5 : f32 to vector<512x128xf32>
    %7 = arith.maximumf %5, %6 : vector<512x128xf32>
    %8 = vector.shape_cast %7 : vector<512x128xf32> to vector<2x256x128xf32>
    %cst_6 = arith.constant dense<0.000000e+00> : vector<2x128xf32>
    %9 = vector.multi_reduction <add>, %8, %cst_6 [1] : vector<2x256x128xf32> to vector<2x128xf32>
    %cst_7 = arith.constant 3.906250e-03 : f32
    %10 = vector.broadcast %cst_7 : f32 to vector<2x128xf32>
    %11 = arith.mulf %9, %10 : vector<2x128xf32>
    %12 = arith.truncf %11 : vector<2x128xf32> to vector<2x128xbf16>
    %c0_8 = arith.constant 0 : index
    %c0_9 = arith.constant 0 : index
    %13 = vector.load %arg3[%c0_8, %c0_9] : memref<128x128xbf16, #tpu.memory_space<vmem>>, vector<128x128xbf16>
    %cst_10 = arith.constant dense<0.000000e+00> : vector<2x128xf32>
    %14 = tpu.matmul %12, %13, %cst_10 {dimension_numbers = #tpu.dot_dimension_numbers<[1], [0], [0], [1], [0, 0, 1, 1], [], []>} : vector<2x128xbf16>, vector<128x128xbf16>, vector<2x128xf32> -> vector<2x128xf32>
    %c0_11 = arith.constant 0 : index
    %c0_12 = arith.constant 0 : index
    %15 = vector.load %arg4[%c0_11, %c0_12] : memref<1x128xf32, #tpu.memory_space<vmem>>, vector<1x128xf32>
    %16 = vector.broadcast %15 : vector<1x128xf32> to vector<2x128xf32>
    %17 = arith.addf %14, %16 : vector<2x128xf32>
    %c0_13 = arith.constant 0 : index
    %c0_14 = arith.constant 0 : index
    %18 = vector.load %arg5[%c0_13, %c0_14] : memref<256x512xbf16, #tpu.memory_space<vmem>>, vector<256x512xbf16>
    %c0_15 = arith.constant 0 : index
    %c0_16 = arith.constant 0 : index
    %19 = vector.load %arg6[%c0_15, %c0_16] : memref<128x128xbf16, #tpu.memory_space<vmem>>, vector<128x128xbf16>
    %c0_17 = arith.constant 0 : index
    %c0_18 = arith.constant 0 : index
    %20 = vector.load %arg7[%c0_17, %c0_18] : memref<1x128xf32, #tpu.memory_space<vmem>>, vector<1x128xf32>
    %21 = vector.shape_cast %20 : vector<1x128xf32> to vector<1x128xf32>
    %22 = vector.broadcast %21 : vector<1x128xf32> to vector<2x128xf32>
    %23 = tpu.iota {dimensions = array<i32: 1>} : vector<2x8xi32>
    %c0_19 = arith.constant 0 : index
    %c0_20 = arith.constant 0 : index
    %24 = vector.load %arg8[%c0_19, %c0_20] : memref<2x128xbf16, #tpu.memory_space<vmem>>, vector<2x128xbf16>
    %c0_i32 = arith.constant 0 : i32
    %25 = vector.broadcast %c0_i32 : i32 to vector<2x8xi32>
    %26 = arith.cmpi eq, %23, %25 : vector<2x8xi32>
    %c1_i32 = arith.constant 1 : i32
    %c0_i32_21 = arith.constant 0 : i32
    %27 = vector.broadcast %c1_i32 : i32 to vector<2x8xi32>
    %28 = vector.broadcast %c0_i32_21 : i32 to vector<2x8xi32>
    %29 = arith.select %26, %27, %28 : vector<2x8xi1>, vector<2x8xi32>
    %30 = arith.truncf %17 : vector<2x128xf32> to vector<2x128xbf16>
    %31 = tpu.concatenate %24, %30 in 1 : vector<2x128xbf16>, vector<2x128xbf16> -> vector<2x256xbf16>
    %cst_22 = arith.constant dense<0.000000e+00> : vector<2x512xf32>
    %32 = tpu.matmul %31, %18, %cst_22 {dimension_numbers = #tpu.dot_dimension_numbers<[1], [0], [0], [1], [0, 0, 1, 1], [], []>} : vector<2x256xbf16>, vector<256x512xbf16>, vector<2x512xf32> -> vector<2x512xf32>
    %33 = vector.extract_strided_slice %32 {offsets = [0, 0], sizes = [2, 256], strides = [1, 1]} : vector<2x512xf32> to vector<2x256xf32>
    %34 = arith.negf %33 : vector<2x256xf32>
    %35 = math.exp %34 : vector<2x256xf32>
    %cst_23 = arith.constant 1.000000e+00 : f32
    %36 = vector.broadcast %cst_23 : f32 to vector<2x256xf32>
    %37 = arith.addf %36, %35 : vector<2x256xf32>
    %38 = arith.divf %36, %37 : vector<2x256xf32>
    %39 = vector.extract_strided_slice %38 {offsets = [0, 0], sizes = [2, 128], strides = [1, 1]} : vector<2x256xf32> to vector<2x128xf32>
    %40 = vector.extract_strided_slice %38 {offsets = [0, 128], sizes = [2, 128], strides = [1, 1]} : vector<2x256xf32> to vector<2x128xf32>
    %41 = vector.extract_strided_slice %32 {offsets = [0, 256], sizes = [2, 128], strides = [1, 1]} : vector<2x512xf32> to vector<2x128xf32>
    %42 = vector.extract_strided_slice %32 {offsets = [0, 384], sizes = [2, 128], strides = [1, 1]} : vector<2x512xf32> to vector<2x128xf32>
    %43 = arith.mulf %39, %42 : vector<2x128xf32>
    %44 = arith.addf %41, %43 : vector<2x128xf32>
    %45 = math.tanh %44 : vector<2x128xf32>
    %cst_24 = arith.constant 1.000000e+00 : f32
    %46 = vector.broadcast %cst_24 : f32 to vector<2x128xf32>
    %47 = arith.subf %46, %40 : vector<2x128xf32>
    %48 = arith.mulf %47, %45 : vector<2x128xf32>
    %49 = arith.mulf %40, %17 : vector<2x128xf32>
    %50 = arith.addf %48, %49 : vector<2x128xf32>
    %51 = arith.truncf %50 : vector<2x128xf32> to vector<2x128xbf16>
    %cst_25 = arith.constant dense<0.000000e+00> : vector<2x128xf32>
    %52 = tpu.matmul %51, %19, %cst_25 {dimension_numbers = #tpu.dot_dimension_numbers<[1], [0], [0], [1], [0, 0, 1, 1], [], []>} : vector<2x128xbf16>, vector<128x128xbf16>, vector<2x128xf32> -> vector<2x128xf32>
    %53 = arith.addf %52, %22 : vector<2x128xf32>
    %c0_26 = arith.constant 0 : index
    %c0_27 = arith.constant 0 : index
    %c0_28 = arith.constant 0 : index
    %54 = vector.load %arg9[%c0_26, %c0_27, %c0_28] : memref<7x2x128xf32, #tpu.memory_space<vmem>>, vector<1x2x128xf32>
    %55 = vector.shape_cast %54 : vector<1x2x128xf32> to vector<2x128xf32>
    %56 = vector.shape_cast %53 : vector<2x128xf32> to vector<1x2x128xf32>
    tpu.vector_store %arg9[%c0_26, %c0_27, %c0_28], %56 {strides = array<i32>} : memref<7x2x128xf32, #tpu.memory_space<vmem>>, vector<1x2x128xf32>,
    %cst_29 = arith.constant dense<0xFF800000> : vector<2xf32>
    %57 = vector.multi_reduction <maximumf>, %53, %cst_29 [1] : vector<2x128xf32> to vector<2xf32>
    %58 = vector.shape_cast %57 : vector<2xf32> to vector<2x1xf32>
    %59 = vector.broadcast %58 : vector<2x1xf32> to vector<2x128xf32>
    %60 = arith.cmpf oeq, %53, %59 : vector<2x128xf32>
    %61 = arith.extui %60 : vector<2x128xi1> to vector<2x128xi32>
    %62 = arith.sitofp %61 : vector<2x128xi32> to vector<2x128xf32>
    %63 = arith.truncf %62 : vector<2x128xf32> to vector<2x128xbf16>
    %64 = tpu.reduce_index %53 {axis = 1 : i32, kind = #tpu.reduction_kind<arg_max>} : vector<2x128xf32> -> vector<2xi32>
    %c1_i32_30 = arith.constant 1 : i32
    %65 = vector.broadcast %c1_i32_30 : i32 to vector<2x8xi32>
    %66 = arith.cmpi eq, %23, %65 : vector<2x8xi32>
    %67 = vector.shape_cast %64 : vector<2xi32> to vector<2x1xi32>
    %68 = vector.shape_cast %67 : vector<2x1xi32> to vector<2x1xi32>
    %69 = vector.broadcast %68 : vector<2x1xi32> to vector<2x8xi32>
    %70 = arith.select %66, %69, %29 : vector<2x8xi1>, vector<2x8xi32>
    %71 = arith.truncf %50 : vector<2x128xf32> to vector<2x128xbf16>
    %72 = tpu.concatenate %63, %71 in 1 : vector<2x128xbf16>, vector<2x128xbf16> -> vector<2x256xbf16>
    %cst_31 = arith.constant dense<0.000000e+00> : vector<2x512xf32>
    %73 = tpu.matmul %72, %18, %cst_31 {dimension_numbers = #tpu.dot_dimension_numbers<[1], [0], [0], [1], [0, 0, 1, 1], [], []>} : vector<2x256xbf16>, vector<256x512xbf16>, vector<2x512xf32> -> vector<2x512xf32>
    %74 = vector.extract_strided_slice %73 {offsets = [0, 0], sizes = [2, 256], strides = [1, 1]} : vector<2x512xf32> to vector<2x256xf32>
    %75 = arith.negf %74 : vector<2x256xf32>
    %76 = math.exp %75 : vector<2x256xf32>
    %cst_32 = arith.constant 1.000000e+00 : f32
    %77 = vector.broadcast %cst_32 : f32 to vector<2x256xf32>
    %78 = arith.addf %77, %76 : vector<2x256xf32>
    %79 = arith.divf %77, %78 : vector<2x256xf32>
    %80 = vector.extract_strided_slice %79 {offsets = [0, 0], sizes = [2, 128], strides = [1, 1]} : vector<2x256xf32> to vector<2x128xf32>
    %81 = vector.extract_strided_slice %79 {offsets = [0, 128], sizes = [2, 128], strides = [1, 1]} : vector<2x256xf32> to vector<2x128xf32>
    %82 = vector.extract_strided_slice %73 {offsets = [0, 256], sizes = [2, 128], strides = [1, 1]} : vector<2x512xf32> to vector<2x128xf32>
    %83 = vector.extract_strided_slice %73 {offsets = [0, 384], sizes = [2, 128], strides = [1, 1]} : vector<2x512xf32> to vector<2x128xf32>
    %84 = arith.mulf %80, %83 : vector<2x128xf32>
    %85 = arith.addf %82, %84 : vector<2x128xf32>
    %86 = math.tanh %85 : vector<2x128xf32>
    %cst_33 = arith.constant 1.000000e+00 : f32
    %87 = vector.broadcast %cst_33 : f32 to vector<2x128xf32>
    %88 = arith.subf %87, %81 : vector<2x128xf32>
    %89 = arith.mulf %88, %86 : vector<2x128xf32>
    %90 = arith.mulf %81, %50 : vector<2x128xf32>
    %91 = arith.addf %89, %90 : vector<2x128xf32>
    %92 = arith.truncf %91 : vector<2x128xf32> to vector<2x128xbf16>
    %cst_34 = arith.constant dense<0.000000e+00> : vector<2x128xf32>
    %93 = tpu.matmul %92, %19, %cst_34 {dimension_numbers = #tpu.dot_dimension_numbers<[1], [0], [0], [1], [0, 0, 1, 1], [], []>} : vector<2x128xbf16>, vector<128x128xbf16>, vector<2x128xf32> -> vector<2x128xf32>
    %94 = arith.addf %93, %22 : vector<2x128xf32>
    %c1 = arith.constant 1 : index
    %c0_35 = arith.constant 0 : index
    %c0_36 = arith.constant 0 : index
    %95 = vector.load %arg9[%c1, %c0_35, %c0_36] : memref<7x2x128xf32, #tpu.memory_space<vmem>>, vector<1x2x128xf32>
    %96 = vector.shape_cast %95 : vector<1x2x128xf32> to vector<2x128xf32>
    %97 = vector.shape_cast %94 : vector<2x128xf32> to vector<1x2x128xf32>
    tpu.vector_store %arg9[%c1, %c0_35, %c0_36], %97 {strides = array<i32>} : memref<7x2x128xf32, #tpu.memory_space<vmem>>, vector<1x2x128xf32>,
    %cst_37 = arith.constant dense<0xFF800000> : vector<2xf32>
    %98 = vector.multi_reduction <maximumf>, %94, %cst_37 [1] : vector<2x128xf32> to vector<2xf32>
    %99 = vector.shape_cast %98 : vector<2xf32> to vector<2x1xf32>
    %100 = vector.broadcast %99 : vector<2x1xf32> to vector<2x128xf32>
    %101 = arith.cmpf oeq, %94, %100 : vector<2x128xf32>
    %102 = arith.extui %101 : vector<2x128xi1> to vector<2x128xi32>
    %103 = arith.sitofp %102 : vector<2x128xi32> to vector<2x128xf32>
    %104 = arith.truncf %103 : vector<2x128xf32> to vector<2x128xbf16>
    %105 = tpu.reduce_index %94 {axis = 1 : i32, kind = #tpu.reduction_kind<arg_max>} : vector<2x128xf32> -> vector<2xi32>
    %c2_i32 = arith.constant 2 : i32
    %106 = vector.broadcast %c2_i32 : i32 to vector<2x8xi32>
    %107 = arith.cmpi eq, %23, %106 : vector<2x8xi32>
    %108 = vector.shape_cast %105 : vector<2xi32> to vector<2x1xi32>
    %109 = vector.shape_cast %108 : vector<2x1xi32> to vector<2x1xi32>
    %110 = vector.broadcast %109 : vector<2x1xi32> to vector<2x8xi32>
    %111 = arith.select %107, %110, %70 : vector<2x8xi1>, vector<2x8xi32>
    %112 = arith.truncf %91 : vector<2x128xf32> to vector<2x128xbf16>
    %113 = tpu.concatenate %104, %112 in 1 : vector<2x128xbf16>, vector<2x128xbf16> -> vector<2x256xbf16>
    %cst_38 = arith.constant dense<0.000000e+00> : vector<2x512xf32>
    %114 = tpu.matmul %113, %18, %cst_38 {dimension_numbers = #tpu.dot_dimension_numbers<[1], [0], [0], [1], [0, 0, 1, 1], [], []>} : vector<2x256xbf16>, vector<256x512xbf16>, vector<2x512xf32> -> vector<2x512xf32>
    %115 = vector.extract_strided_slice %114 {offsets = [0, 0], sizes = [2, 256], strides = [1, 1]} : vector<2x512xf32> to vector<2x256xf32>
    %116 = arith.negf %115 : vector<2x256xf32>
    %117 = math.exp %116 : vector<2x256xf32>
    %cst_39 = arith.constant 1.000000e+00 : f32
    %118 = vector.broadcast %cst_39 : f32 to vector<2x256xf32>
    %119 = arith.addf %118, %117 : vector<2x256xf32>
    %120 = arith.divf %118, %119 : vector<2x256xf32>
    %121 = vector.extract_strided_slice %120 {offsets = [0, 0], sizes = [2, 128], strides = [1, 1]} : vector<2x256xf32> to vector<2x128xf32>
    %122 = vector.extract_strided_slice %120 {offsets = [0, 128], sizes = [2, 128], strides = [1, 1]} : vector<2x256xf32> to vector<2x128xf32>
    %123 = vector.extract_strided_slice %114 {offsets = [0, 256], sizes = [2, 128], strides = [1, 1]} : vector<2x512xf32> to vector<2x128xf32>
    %124 = vector.extract_strided_slice %114 {offsets = [0, 384], sizes = [2, 128], strides = [1, 1]} : vector<2x512xf32> to vector<2x128xf32>
    %125 = arith.mulf %121, %124 : vector<2x128xf32>
    %126 = arith.addf %123, %125 : vector<2x128xf32>
    %127 = math.tanh %126 : vector<2x128xf32>
    %cst_40 = arith.constant 1.000000e+00 : f32
    %128 = vector.broadcast %cst_40 : f32 to vector<2x128xf32>
    %129 = arith.subf %128, %122 : vector<2x128xf32>
    %130 = arith.mulf %129, %127 : vector<2x128xf32>
    %131 = arith.mulf %122, %91 : vector<2x128xf32>
    %132 = arith.addf %130, %131 : vector<2x128xf32>
    %133 = arith.truncf %132 : vector<2x128xf32> to vector<2x128xbf16>
    %cst_41 = arith.constant dense<0.000000e+00> : vector<2x128xf32>
    %134 = tpu.matmul %133, %19, %cst_41 {dimension_numbers = #tpu.dot_dimension_numbers<[1], [0], [0], [1], [0, 0, 1, 1], [], []>} : vector<2x128xbf16>, vector<128x128xbf16>, vector<2x128xf32> -> vector<2x128xf32>
    %135 = arith.addf %134, %22 : vector<2x128xf32>
    %c2 = arith.constant 2 : index
    %c0_42 = arith.constant 0 : index
    %c0_43 = arith.constant 0 : index
    %136 = vector.load %arg9[%c2, %c0_42, %c0_43] : memref<7x2x128xf32, #tpu.memory_space<vmem>>, vector<1x2x128xf32>
    %137 = vector.shape_cast %136 : vector<1x2x128xf32> to vector<2x128xf32>
    %138 = vector.shape_cast %135 : vector<2x128xf32> to vector<1x2x128xf32>
    tpu.vector_store %arg9[%c2, %c0_42, %c0_43], %138 {strides = array<i32>} : memref<7x2x128xf32, #tpu.memory_space<vmem>>, vector<1x2x128xf32>,
    %cst_44 = arith.constant dense<0xFF800000> : vector<2xf32>
    %139 = vector.multi_reduction <maximumf>, %135, %cst_44 [1] : vector<2x128xf32> to vector<2xf32>
    %140 = vector.shape_cast %139 : vector<2xf32> to vector<2x1xf32>
    %141 = vector.broadcast %140 : vector<2x1xf32> to vector<2x128xf32>
    %142 = arith.cmpf oeq, %135, %141 : vector<2x128xf32>
    %143 = arith.extui %142 : vector<2x128xi1> to vector<2x128xi32>
    %144 = arith.sitofp %143 : vector<2x128xi32> to vector<2x128xf32>
    %145 = arith.truncf %144 : vector<2x128xf32> to vector<2x128xbf16>
    %146 = tpu.reduce_index %135 {axis = 1 : i32, kind = #tpu.reduction_kind<arg_max>} : vector<2x128xf32> -> vector<2xi32>
    %c3_i32 = arith.constant 3 : i32
    %147 = vector.broadcast %c3_i32 : i32 to vector<2x8xi32>
    %148 = arith.cmpi eq, %23, %147 : vector<2x8xi32>
    %149 = vector.shape_cast %146 : vector<2xi32> to vector<2x1xi32>
    %150 = vector.shape_cast %149 : vector<2x1xi32> to vector<2x1xi32>
    %151 = vector.broadcast %150 : vector<2x1xi32> to vector<2x8xi32>
    %152 = arith.select %148, %151, %111 : vector<2x8xi1>, vector<2x8xi32>
    %153 = arith.truncf %132 : vector<2x128xf32> to vector<2x128xbf16>
    %154 = tpu.concatenate %145, %153 in 1 : vector<2x128xbf16>, vector<2x128xbf16> -> vector<2x256xbf16>
    %cst_45 = arith.constant dense<0.000000e+00> : vector<2x512xf32>
    %155 = tpu.matmul %154, %18, %cst_45 {dimension_numbers = #tpu.dot_dimension_numbers<[1], [0], [0], [1], [0, 0, 1, 1], [], []>} : vector<2x256xbf16>, vector<256x512xbf16>, vector<2x512xf32> -> vector<2x512xf32>
    %156 = vector.extract_strided_slice %155 {offsets = [0, 0], sizes = [2, 256], strides = [1, 1]} : vector<2x512xf32> to vector<2x256xf32>
    %157 = arith.negf %156 : vector<2x256xf32>
    %158 = math.exp %157 : vector<2x256xf32>
    %cst_46 = arith.constant 1.000000e+00 : f32
    %159 = vector.broadcast %cst_46 : f32 to vector<2x256xf32>
    %160 = arith.addf %159, %158 : vector<2x256xf32>
    %161 = arith.divf %159, %160 : vector<2x256xf32>
    %162 = vector.extract_strided_slice %161 {offsets = [0, 0], sizes = [2, 128], strides = [1, 1]} : vector<2x256xf32> to vector<2x128xf32>
    %163 = vector.extract_strided_slice %161 {offsets = [0, 128], sizes = [2, 128], strides = [1, 1]} : vector<2x256xf32> to vector<2x128xf32>
    %164 = vector.extract_strided_slice %155 {offsets = [0, 256], sizes = [2, 128], strides = [1, 1]} : vector<2x512xf32> to vector<2x128xf32>
    %165 = vector.extract_strided_slice %155 {offsets = [0, 384], sizes = [2, 128], strides = [1, 1]} : vector<2x512xf32> to vector<2x128xf32>
    %166 = arith.mulf %162, %165 : vector<2x128xf32>
    %167 = arith.addf %164, %166 : vector<2x128xf32>
    %168 = math.tanh %167 : vector<2x128xf32>
    %cst_47 = arith.constant 1.000000e+00 : f32
    %169 = vector.broadcast %cst_47 : f32 to vector<2x128xf32>
    %170 = arith.subf %169, %163 : vector<2x128xf32>
    %171 = arith.mulf %170, %168 : vector<2x128xf32>
    %172 = arith.mulf %163, %132 : vector<2x128xf32>
    %173 = arith.addf %171, %172 : vector<2x128xf32>
    %174 = arith.truncf %173 : vector<2x128xf32> to vector<2x128xbf16>
    %cst_48 = arith.constant dense<0.000000e+00> : vector<2x128xf32>
    %175 = tpu.matmul %174, %19, %cst_48 {dimension_numbers = #tpu.dot_dimension_numbers<[1], [0], [0], [1], [0, 0, 1, 1], [], []>} : vector<2x128xbf16>, vector<128x128xbf16>, vector<2x128xf32> -> vector<2x128xf32>
    %176 = arith.addf %175, %22 : vector<2x128xf32>
    %c3 = arith.constant 3 : index
    %c0_49 = arith.constant 0 : index
    %c0_50 = arith.constant 0 : index
    %177 = vector.load %arg9[%c3, %c0_49, %c0_50] : memref<7x2x128xf32, #tpu.memory_space<vmem>>, vector<1x2x128xf32>
    %178 = vector.shape_cast %177 : vector<1x2x128xf32> to vector<2x128xf32>
    %179 = vector.shape_cast %176 : vector<2x128xf32> to vector<1x2x128xf32>
    tpu.vector_store %arg9[%c3, %c0_49, %c0_50], %179 {strides = array<i32>} : memref<7x2x128xf32, #tpu.memory_space<vmem>>, vector<1x2x128xf32>,
    %cst_51 = arith.constant dense<0xFF800000> : vector<2xf32>
    %180 = vector.multi_reduction <maximumf>, %176, %cst_51 [1] : vector<2x128xf32> to vector<2xf32>
    %181 = vector.shape_cast %180 : vector<2xf32> to vector<2x1xf32>
    %182 = vector.broadcast %181 : vector<2x1xf32> to vector<2x128xf32>
    %183 = arith.cmpf oeq, %176, %182 : vector<2x128xf32>
    %184 = arith.extui %183 : vector<2x128xi1> to vector<2x128xi32>
    %185 = arith.sitofp %184 : vector<2x128xi32> to vector<2x128xf32>
    %186 = arith.truncf %185 : vector<2x128xf32> to vector<2x128xbf16>
    %187 = tpu.reduce_index %176 {axis = 1 : i32, kind = #tpu.reduction_kind<arg_max>} : vector<2x128xf32> -> vector<2xi32>
    %c4_i32 = arith.constant 4 : i32
    %188 = vector.broadcast %c4_i32 : i32 to vector<2x8xi32>
    %189 = arith.cmpi eq, %23, %188 : vector<2x8xi32>
    %190 = vector.shape_cast %187 : vector<2xi32> to vector<2x1xi32>
    %191 = vector.shape_cast %190 : vector<2x1xi32> to vector<2x1xi32>
    %192 = vector.broadcast %191 : vector<2x1xi32> to vector<2x8xi32>
    %193 = arith.select %189, %192, %152 : vector<2x8xi1>, vector<2x8xi32>
    %194 = arith.truncf %173 : vector<2x128xf32> to vector<2x128xbf16>
    %195 = tpu.concatenate %186, %194 in 1 : vector<2x128xbf16>, vector<2x128xbf16> -> vector<2x256xbf16>
    %cst_52 = arith.constant dense<0.000000e+00> : vector<2x512xf32>
    %196 = tpu.matmul %195, %18, %cst_52 {dimension_numbers = #tpu.dot_dimension_numbers<[1], [0], [0], [1], [0, 0, 1, 1], [], []>} : vector<2x256xbf16>, vector<256x512xbf16>, vector<2x512xf32> -> vector<2x512xf32>
    %197 = vector.extract_strided_slice %196 {offsets = [0, 0], sizes = [2, 256], strides = [1, 1]} : vector<2x512xf32> to vector<2x256xf32>
    %198 = arith.negf %197 : vector<2x256xf32>
    %199 = math.exp %198 : vector<2x256xf32>
    %cst_53 = arith.constant 1.000000e+00 : f32
    %200 = vector.broadcast %cst_53 : f32 to vector<2x256xf32>
    %201 = arith.addf %200, %199 : vector<2x256xf32>
    %202 = arith.divf %200, %201 : vector<2x256xf32>
    %203 = vector.extract_strided_slice %202 {offsets = [0, 0], sizes = [2, 128], strides = [1, 1]} : vector<2x256xf32> to vector<2x128xf32>
    %204 = vector.extract_strided_slice %202 {offsets = [0, 128], sizes = [2, 128], strides = [1, 1]} : vector<2x256xf32> to vector<2x128xf32>
    %205 = vector.extract_strided_slice %196 {offsets = [0, 256], sizes = [2, 128], strides = [1, 1]} : vector<2x512xf32> to vector<2x128xf32>
    %206 = vector.extract_strided_slice %196 {offsets = [0, 384], sizes = [2, 128], strides = [1, 1]} : vector<2x512xf32> to vector<2x128xf32>
    %207 = arith.mulf %203, %206 : vector<2x128xf32>
    %208 = arith.addf %205, %207 : vector<2x128xf32>
    %209 = math.tanh %208 : vector<2x128xf32>
    %cst_54 = arith.constant 1.000000e+00 : f32
    %210 = vector.broadcast %cst_54 : f32 to vector<2x128xf32>
    %211 = arith.subf %210, %204 : vector<2x128xf32>
    %212 = arith.mulf %211, %209 : vector<2x128xf32>
    %213 = arith.mulf %204, %173 : vector<2x128xf32>
    %214 = arith.addf %212, %213 : vector<2x128xf32>
    %215 = arith.truncf %214 : vector<2x128xf32> to vector<2x128xbf16>
    %cst_55 = arith.constant dense<0.000000e+00> : vector<2x128xf32>
    %216 = tpu.matmul %215, %19, %cst_55 {dimension_numbers = #tpu.dot_dimension_numbers<[1], [0], [0], [1], [0, 0, 1, 1], [], []>} : vector<2x128xbf16>, vector<128x128xbf16>, vector<2x128xf32> -> vector<2x128xf32>
    %217 = arith.addf %216, %22 : vector<2x128xf32>
    %c4 = arith.constant 4 : index
    %c0_56 = arith.constant 0 : index
    %c0_57 = arith.constant 0 : index
    %218 = vector.load %arg9[%c4, %c0_56, %c0_57] : memref<7x2x128xf32, #tpu.memory_space<vmem>>, vector<1x2x128xf32>
    %219 = vector.shape_cast %218 : vector<1x2x128xf32> to vector<2x128xf32>
    %220 = vector.shape_cast %217 : vector<2x128xf32> to vector<1x2x128xf32>
    tpu.vector_store %arg9[%c4, %c0_56, %c0_57], %220 {strides = array<i32>} : memref<7x2x128xf32, #tpu.memory_space<vmem>>, vector<1x2x128xf32>,
    %cst_58 = arith.constant dense<0xFF800000> : vector<2xf32>
    %221 = vector.multi_reduction <maximumf>, %217, %cst_58 [1] : vector<2x128xf32> to vector<2xf32>
    %222 = vector.shape_cast %221 : vector<2xf32> to vector<2x1xf32>
    %223 = vector.broadcast %222 : vector<2x1xf32> to vector<2x128xf32>
    %224 = arith.cmpf oeq, %217, %223 : vector<2x128xf32>
    %225 = arith.extui %224 : vector<2x128xi1> to vector<2x128xi32>
    %226 = arith.sitofp %225 : vector<2x128xi32> to vector<2x128xf32>
    %227 = arith.truncf %226 : vector<2x128xf32> to vector<2x128xbf16>
    %228 = tpu.reduce_index %217 {axis = 1 : i32, kind = #tpu.reduction_kind<arg_max>} : vector<2x128xf32> -> vector<2xi32>
    %c5_i32 = arith.constant 5 : i32
    %229 = vector.broadcast %c5_i32 : i32 to vector<2x8xi32>
    %230 = arith.cmpi eq, %23, %229 : vector<2x8xi32>
    %231 = vector.shape_cast %228 : vector<2xi32> to vector<2x1xi32>
    %232 = vector.shape_cast %231 : vector<2x1xi32> to vector<2x1xi32>
    %233 = vector.broadcast %232 : vector<2x1xi32> to vector<2x8xi32>
    %234 = arith.select %230, %233, %193 : vector<2x8xi1>, vector<2x8xi32>
    %235 = arith.truncf %214 : vector<2x128xf32> to vector<2x128xbf16>
    %236 = tpu.concatenate %227, %235 in 1 : vector<2x128xbf16>, vector<2x128xbf16> -> vector<2x256xbf16>
    %cst_59 = arith.constant dense<0.000000e+00> : vector<2x512xf32>
    %237 = tpu.matmul %236, %18, %cst_59 {dimension_numbers = #tpu.dot_dimension_numbers<[1], [0], [0], [1], [0, 0, 1, 1], [], []>} : vector<2x256xbf16>, vector<256x512xbf16>, vector<2x512xf32> -> vector<2x512xf32>
    %238 = vector.extract_strided_slice %237 {offsets = [0, 0], sizes = [2, 256], strides = [1, 1]} : vector<2x512xf32> to vector<2x256xf32>
    %239 = arith.negf %238 : vector<2x256xf32>
    %240 = math.exp %239 : vector<2x256xf32>
    %cst_60 = arith.constant 1.000000e+00 : f32
    %241 = vector.broadcast %cst_60 : f32 to vector<2x256xf32>
    %242 = arith.addf %241, %240 : vector<2x256xf32>
    %243 = arith.divf %241, %242 : vector<2x256xf32>
    %244 = vector.extract_strided_slice %243 {offsets = [0, 0], sizes = [2, 128], strides = [1, 1]} : vector<2x256xf32> to vector<2x128xf32>
    %245 = vector.extract_strided_slice %243 {offsets = [0, 128], sizes = [2, 128], strides = [1, 1]} : vector<2x256xf32> to vector<2x128xf32>
    %246 = vector.extract_strided_slice %237 {offsets = [0, 256], sizes = [2, 128], strides = [1, 1]} : vector<2x512xf32> to vector<2x128xf32>
    %247 = vector.extract_strided_slice %237 {offsets = [0, 384], sizes = [2, 128], strides = [1, 1]} : vector<2x512xf32> to vector<2x128xf32>
    %248 = arith.mulf %244, %247 : vector<2x128xf32>
    %249 = arith.addf %246, %248 : vector<2x128xf32>
    %250 = math.tanh %249 : vector<2x128xf32>
    %cst_61 = arith.constant 1.000000e+00 : f32
    %251 = vector.broadcast %cst_61 : f32 to vector<2x128xf32>
    %252 = arith.subf %251, %245 : vector<2x128xf32>
    %253 = arith.mulf %252, %250 : vector<2x128xf32>
    %254 = arith.mulf %245, %214 : vector<2x128xf32>
    %255 = arith.addf %253, %254 : vector<2x128xf32>
    %256 = arith.truncf %255 : vector<2x128xf32> to vector<2x128xbf16>
    %cst_62 = arith.constant dense<0.000000e+00> : vector<2x128xf32>
    %257 = tpu.matmul %256, %19, %cst_62 {dimension_numbers = #tpu.dot_dimension_numbers<[1], [0], [0], [1], [0, 0, 1, 1], [], []>} : vector<2x128xbf16>, vector<128x128xbf16>, vector<2x128xf32> -> vector<2x128xf32>
    %258 = arith.addf %257, %22 : vector<2x128xf32>
    %c5 = arith.constant 5 : index
    %c0_63 = arith.constant 0 : index
    %c0_64 = arith.constant 0 : index
    %259 = vector.load %arg9[%c5, %c0_63, %c0_64] : memref<7x2x128xf32, #tpu.memory_space<vmem>>, vector<1x2x128xf32>
    %260 = vector.shape_cast %259 : vector<1x2x128xf32> to vector<2x128xf32>
    %261 = vector.shape_cast %258 : vector<2x128xf32> to vector<1x2x128xf32>
    tpu.vector_store %arg9[%c5, %c0_63, %c0_64], %261 {strides = array<i32>} : memref<7x2x128xf32, #tpu.memory_space<vmem>>, vector<1x2x128xf32>,
    %cst_65 = arith.constant dense<0xFF800000> : vector<2xf32>
    %262 = vector.multi_reduction <maximumf>, %258, %cst_65 [1] : vector<2x128xf32> to vector<2xf32>
    %263 = vector.shape_cast %262 : vector<2xf32> to vector<2x1xf32>
    %264 = vector.broadcast %263 : vector<2x1xf32> to vector<2x128xf32>
    %265 = arith.cmpf oeq, %258, %264 : vector<2x128xf32>
    %266 = arith.extui %265 : vector<2x128xi1> to vector<2x128xi32>
    %267 = arith.sitofp %266 : vector<2x128xi32> to vector<2x128xf32>
    %268 = arith.truncf %267 : vector<2x128xf32> to vector<2x128xbf16>
    %269 = tpu.reduce_index %258 {axis = 1 : i32, kind = #tpu.reduction_kind<arg_max>} : vector<2x128xf32> -> vector<2xi32>
    %c6_i32 = arith.constant 6 : i32
    %270 = vector.broadcast %c6_i32 : i32 to vector<2x8xi32>
    %271 = arith.cmpi eq, %23, %270 : vector<2x8xi32>
    %272 = vector.shape_cast %269 : vector<2xi32> to vector<2x1xi32>
    %273 = vector.shape_cast %272 : vector<2x1xi32> to vector<2x1xi32>
    %274 = vector.broadcast %273 : vector<2x1xi32> to vector<2x8xi32>
    %275 = arith.select %271, %274, %234 : vector<2x8xi1>, vector<2x8xi32>
    %276 = arith.truncf %255 : vector<2x128xf32> to vector<2x128xbf16>
    %277 = tpu.concatenate %268, %276 in 1 : vector<2x128xbf16>, vector<2x128xbf16> -> vector<2x256xbf16>
    %cst_66 = arith.constant dense<0.000000e+00> : vector<2x512xf32>
    %278 = tpu.matmul %277, %18, %cst_66 {dimension_numbers = #tpu.dot_dimension_numbers<[1], [0], [0], [1], [0, 0, 1, 1], [], []>} : vector<2x256xbf16>, vector<256x512xbf16>, vector<2x512xf32> -> vector<2x512xf32>
    %279 = vector.extract_strided_slice %278 {offsets = [0, 0], sizes = [2, 256], strides = [1, 1]} : vector<2x512xf32> to vector<2x256xf32>
    %280 = arith.negf %279 : vector<2x256xf32>
    %281 = math.exp %280 : vector<2x256xf32>
    %cst_67 = arith.constant 1.000000e+00 : f32
    %282 = vector.broadcast %cst_67 : f32 to vector<2x256xf32>
    %283 = arith.addf %282, %281 : vector<2x256xf32>
    %284 = arith.divf %282, %283 : vector<2x256xf32>
    %285 = vector.extract_strided_slice %284 {offsets = [0, 0], sizes = [2, 128], strides = [1, 1]} : vector<2x256xf32> to vector<2x128xf32>
    %286 = vector.extract_strided_slice %284 {offsets = [0, 128], sizes = [2, 128], strides = [1, 1]} : vector<2x256xf32> to vector<2x128xf32>
    %287 = vector.extract_strided_slice %278 {offsets = [0, 256], sizes = [2, 128], strides = [1, 1]} : vector<2x512xf32> to vector<2x128xf32>
    %288 = vector.extract_strided_slice %278 {offsets = [0, 384], sizes = [2, 128], strides = [1, 1]} : vector<2x512xf32> to vector<2x128xf32>
    %289 = arith.mulf %285, %288 : vector<2x128xf32>
    %290 = arith.addf %287, %289 : vector<2x128xf32>
    %291 = math.tanh %290 : vector<2x128xf32>
    %cst_68 = arith.constant 1.000000e+00 : f32
    %292 = vector.broadcast %cst_68 : f32 to vector<2x128xf32>
    %293 = arith.subf %292, %286 : vector<2x128xf32>
    %294 = arith.mulf %293, %291 : vector<2x128xf32>
    %295 = arith.mulf %286, %255 : vector<2x128xf32>
    %296 = arith.addf %294, %295 : vector<2x128xf32>
    %297 = arith.truncf %296 : vector<2x128xf32> to vector<2x128xbf16>
    %cst_69 = arith.constant dense<0.000000e+00> : vector<2x128xf32>
    %298 = tpu.matmul %297, %19, %cst_69 {dimension_numbers = #tpu.dot_dimension_numbers<[1], [0], [0], [1], [0, 0, 1, 1], [], []>} : vector<2x128xbf16>, vector<128x128xbf16>, vector<2x128xf32> -> vector<2x128xf32>
    %299 = arith.addf %298, %22 : vector<2x128xf32>
    %c6 = arith.constant 6 : index
    %c0_70 = arith.constant 0 : index
    %c0_71 = arith.constant 0 : index
    %300 = vector.load %arg9[%c6, %c0_70, %c0_71] : memref<7x2x128xf32, #tpu.memory_space<vmem>>, vector<1x2x128xf32>
    %301 = vector.shape_cast %300 : vector<1x2x128xf32> to vector<2x128xf32>
    %302 = vector.shape_cast %299 : vector<2x128xf32> to vector<1x2x128xf32>
    tpu.vector_store %arg9[%c6, %c0_70, %c0_71], %302 {strides = array<i32>} : memref<7x2x128xf32, #tpu.memory_space<vmem>>, vector<1x2x128xf32>,
    %303 = tpu.reduce_index %299 {axis = 1 : i32, kind = #tpu.reduction_kind<arg_max>} : vector<2x128xf32> -> vector<2xi32>
    %c7_i32 = arith.constant 7 : i32
    %304 = vector.broadcast %c7_i32 : i32 to vector<2x8xi32>
    %305 = arith.cmpi eq, %23, %304 : vector<2x8xi32>
    %306 = vector.shape_cast %303 : vector<2xi32> to vector<2x1xi32>
    %307 = vector.shape_cast %306 : vector<2x1xi32> to vector<2x1xi32>
    %308 = vector.broadcast %307 : vector<2x1xi32> to vector<2x8xi32>
    %309 = arith.select %305, %308, %275 : vector<2x8xi1>, vector<2x8xi32>
    %c0_72 = arith.constant 0 : index
    %c0_73 = arith.constant 0 : index
    %310 = vector.load %arg10[%c0_72, %c0_73] : memref<2x8xi32, #tpu.memory_space<vmem>>, vector<2x8xi32>
    tpu.vector_store %arg10[%c0_72, %c0_73], %309 {strides = array<i32>} : memref<2x8xi32, #tpu.memory_space<vmem>>, vector<2x8xi32>,
    return
  }
}

</mosaic_0001>

<llo_original>
// kernel: model2_forward.1
$region0: #{model2_forward.1}
  #allocation0 [shape = 'u32[]', space=smem, size = 0x4, offset = 0x4, fixed_abs, tag = 'smem constant byte address 0x4 - core index']
  #allocation1 [shape = 'u32[144,128]{1,0:T(1,128)}', space=vmem, size = 0x12000, scoped, tag = 'internal scratch']
  %s0 = inlined_call_operand.vmem [shape: bf16[512,32], index: 0, kind: input, shape index: {}]
  %s1 = inlined_call_operand.vmem [shape: bf16[32,128], index: 1, kind: input, shape index: {}]
  %s2 = inlined_call_operand.vmem [shape: f32[1,128], index: 2, kind: input, shape index: {}]
  %s3 = inlined_call_operand.vmem [shape: bf16[128,128], index: 3, kind: input, shape index: {}]
  %s4 = inlined_call_operand.vmem [shape: f32[1,128], index: 4, kind: input, shape index: {}]
  %s5 = inlined_call_operand.vmem [shape: bf16[256,512], index: 5, kind: input, shape index: {}]
  %s6 = inlined_call_operand.vmem [shape: bf16[128,128], index: 6, kind: input, shape index: {}]
  %s7 = inlined_call_operand.vmem [shape: f32[1,128], index: 7, kind: input, shape index: {}]
  %s8 = inlined_call_operand.vmem [shape: bf16[2,128], index: 8, kind: input, shape index: {}]
  %s9 = inlined_call_operand.hbm [shape: f32[7,2,128], index: 9, kind: output, shape index: {0}]
  %s10 = inlined_call_operand.hbm [shape: s32[2,8], index: 10, kind: output, shape index: {1}]
  %11 = xla_tuple %s9, %s10
  %s12 = sld [smem:[#allocation0]]
  $region54: #{model2_forward.1} parent=0
    _
  %s14 = ssub.s32 1, %s12
  %s15 = scalar_select 0, %s14, %s12
  $region1: #{model2_forward.1} parent=0
    #allocation2 [shape = 'u8[7168]{0}', space=vmem, size = 0x1c00, scoped, tag = 'output window, operand 0, single buffered']
    #allocation3 [shape = 's32[1]{0}', space=sflag, size = 0x4, scoped, tag = 'scoped memory for model2_forward.1']
    #allocation4 [shape = 'u8[1024]{0}', space=vmem, size = 0x400, scoped, tag = 'output window, operand 1, single buffered']
    #allocation5 [shape = 's32[1]{0}', space=sflag, size = 0x4, scoped, tag = 'scoped memory for model2_forward.1']
    %16 = vsyncpa [#allocation3], 0
    %17 = vsyncpa [#allocation5], 0
    // Predicated region
    $region2: #{model2_forward.1} parent=1 // pred_check
      _
    $region3: #{model2_forward.1} parent=1 // pred_check_branch
      %19 = sbr.rel (0) target = $region5
    $region4: #{model2_forward.1} parent=1 // pred_region
      _
    $region5: #{model2_forward.1} parent=1 // pred_fallthru
      _
    // Predicated region
    $region6: #{model2_forward.1} parent=1 // pred_check
      _
    $region7: #{model2_forward.1} parent=1 // pred_check_branch
      %21 = sbr.rel (0) target = $region9
    $region8: #{model2_forward.1} parent=1 // pred_region
      _
    $region9: #{model2_forward.1} parent=1 // pred_fallthru
      _
    // Predicated region
    $region10: #{model2_forward.1} parent=1 // pred_check
      _
    $region11: #{model2_forward.1} parent=1 // pred_check_branch
      %23 = sbr.rel (0) target = $region13
    $region12: #{model2_forward.1} parent=1 // pred_region
      _
    $region13: #{model2_forward.1} parent=1 // pred_fallthru
      _
    // Predicated region
    $region14: #{model2_forward.1} parent=1 // pred_check
      _
    $region15: #{model2_forward.1} parent=1 // pred_check_branch
      %25 = sbr.rel (0) target = $region17
    $region16: #{model2_forward.1} parent=1 // pred_region
      _
    $region17: #{model2_forward.1} parent=1 // pred_fallthru
      _
    // Predicated region
    $region18: #{model2_forward.1} parent=1 // pred_check
      _
    $region19: #{model2_forward.1} parent=1 // pred_check_branch
      %27 = sbr.rel (0) target = $region21
    $region20: #{model2_forward.1} parent=1 // pred_region
      _
    $region21: #{model2_forward.1} parent=1 // pred_fallthru
      _
    // Predicated region
    $region22: #{model2_forward.1} parent=1 // pred_check
      _
    $region23: #{model2_forward.1} parent=1 // pred_check_branch
      %29 = sbr.rel (0) target = $region25
    $region24: #{model2_forward.1} parent=1 // pred_region
      _
    $region25: #{model2_forward.1} parent=1 // pred_fallthru
      _
    // Predicated region
    $region26: #{model2_forward.1} parent=1 // pred_check
      _
    $region27: #{model2_forward.1} parent=1 // pred_check_branch
      %31 = sbr.rel (0) target = $region29
    $region28: #{model2_forward.1} parent=1 // pred_region
      _
    $region29: #{model2_forward.1} parent=1 // pred_fallthru
      _
    // Predicated region
    $region30: #{model2_forward.1} parent=1 // pred_check
      _
    $region31: #{model2_forward.1} parent=1 // pred_check_branch
      %33 = sbr.rel (0) target = $region33
    $region32: #{model2_forward.1} parent=1 // pred_region
      _
    $region33: #{model2_forward.1} parent=1 // pred_fallthru
      _
    // Predicated region
    $region34: #{model2_forward.1} parent=1 // pred_check
      _
    $region35: #{model2_forward.1} parent=1 // pred_check_branch
      %35 = sbr.rel (0) target = $region37
    $region36: #{model2_forward.1} parent=1 // pred_region
      _
    $region37: #{model2_forward.1} parent=1 // pred_fallthru
      _
    %v37 = vld [vmem:[%s0] sm:$0xf]
    %v38 = vld [vmem:[%s0 + $0x4] sm:$0xf]
    %v39 = vld [vmem:[%s0 + $0x8] sm:$0xf]
    %v40 = vld [vmem:[%s0 + $0xc] sm:$0xf]
    %v41 = vld [vmem:[%s0 + $0x10] sm:$0xf]
    %v42 = vld [vmem:[%s0 + $0x14] sm:$0xf]
    %v43 = vld [vmem:[%s0 + $0x18] sm:$0xf]
    %v44 = vld [vmem:[%s0 + $0x1c] sm:$0xf]
    %v45 = vld [vmem:[%s0 + $0x20] sm:$0xf]
    %v46 = vld [vmem:[%s0 + $0x24] sm:$0xf]
    %v47 = vld [vmem:[%s0 + $0x28] sm:$0xf]
    %v48 = vld [vmem:[%s0 + $0x2c] sm:$0xf]
    %v49 = vld [vmem:[%s0 + $0x30] sm:$0xf]
    %v50 = vld [vmem:[%s0 + $0x34] sm:$0xf]
    %v51 = vld [vmem:[%s0 + $0x38] sm:$0xf]
    %v52 = vld [vmem:[%s0 + $0x3c] sm:$0xf]
    %v53 = vld [vmem:[%s0 + $0x40] sm:$0xf]
    %v54 = vld [vmem:[%s0 + $0x44] sm:$0xf]
    %v55 = vld [vmem:[%s0 + $0x48] sm:$0xf]
    %v56 = vld [vmem:[%s0 + $0x4c] sm:$0xf]
    %v57 = vld [vmem:[%s0 + $0x50] sm:$0xf]
    %v58 = vld [vmem:[%s0 + $0x54] sm:$0xf]
    %v59 = vld [vmem:[%s0 + $0x58] sm:$0xf]
    %v60 = vld [vmem:[%s0 + $0x5c] sm:$0xf]
    %v61 = vld [vmem:[%s0 + $0x60] sm:$0xf]
    %v62 = vld [vmem:[%s0 + $0x64] sm:$0xf]
    %v63 = vld [vmem:[%s0 + $0x68] sm:$0xf]
    %v64 = vld [vmem:[%s0 + $0x6c] sm:$0xf]
    %v65 = vld [vmem:[%s0 + $0x70] sm:$0xf]
    %v66 = vld [vmem:[%s0 + $0x74] sm:$0xf]
    %v67 = vld [vmem:[%s0 + $0x78] sm:$0xf]
    %v68 = vld [vmem:[%s0 + $0x7c] sm:$0xf]
    %v69 = vld [vmem:[%s0 + $0x80] sm:$0xf]
    %v70 = vld [vmem:[%s0 + $0x84] sm:$0xf]
    %v71 = vld [vmem:[%s0 + $0x88] sm:$0xf]
    %v72 = vld [vmem:[%s0 + $0x8c] sm:$0xf]
    %v73 = vld [vmem:[%s0 + $0x90] sm:$0xf]
    %v74 = vld [vmem:[%s0 + $0x94] sm:$0xf]
    %v75 = vld [vmem:[%s0 + $0x98] sm:$0xf]
    %v76 = vld [vmem:[%s0 + $0x9c] sm:$0xf]
    %v77 = vld [vmem:[%s0 + $0xa0] sm:$0xf]
    %v78 = vld [vmem:[%s0 + $0xa4] sm:$0xf]
    %v79 = vld [vmem:[%s0 + $0xa8] sm:$0xf]
    %v80 = vld [vmem:[%s0 + $0xac] sm:$0xf]
    %v81 = vld [vmem:[%s0 + $0xb0] sm:$0xf]
    %v82 = vld [vmem:[%s0 + $0xb4] sm:$0xf]
    %v83 = vld [vmem:[%s0 + $0xb8] sm:$0xf]
    %v84 = vld [vmem:[%s0 + $0xbc] sm:$0xf]
    %v85 = vld [vmem:[%s0 + $0xc0] sm:$0xf]
    %v86 = vld [vmem:[%s0 + $0xc4] sm:$0xf]
    %v87 = vld [vmem:[%s0 + $0xc8] sm:$0xf]
    %v88 = vld [vmem:[%s0 + $0xcc] sm:$0xf]
    %v89 = vld [vmem:[%s0 + $0xd0] sm:$0xf]
    %v90 = vld [vmem:[%s0 + $0xd4] sm:$0xf]
    %v91 = vld [vmem:[%s0 + $0xd8] sm:$0xf]
    %v92 = vld [vmem:[%s0 + $0xdc] sm:$0xf]
    %v93 = vld [vmem:[%s0 + $0xe0] sm:$0xf]
    %v94 = vld [vmem:[%s0 + $0xe4] sm:$0xf]
    %v95 = vld [vmem:[%s0 + $0xe8] sm:$0xf]
    %v96 = vld [vmem:[%s0 + $0xec] sm:$0xf]
    %v97 = vld [vmem:[%s0 + $0xf0] sm:$0xf]
    %v98 = vld [vmem:[%s0 + $0xf4] sm:$0xf]
    %v99 = vld [vmem:[%s0 + $0xf8] sm:$0xf]
    %v100 = vld [vmem:[%s0 + $0xfc] sm:$0xf]
    %v101 = vld [vmem:[%s1] sm:$0xf]
    %v102 = vld [vmem:[%s1 + $0x4] sm:$0xf]
    %v103 = vld [vmem:[%s1 + $0x8] sm:$0xf]
    %v104 = vld [vmem:[%s1 + $0xc] sm:$0xf]
    %v105 = vld [vmem:[%s2] sm:$0x1]
    %v107 = vlaneseq
    %v108 = vshrl.u32 %v107, 7
    %v109 = vsub.s32 0, %v108
    %v110 = vrot.slane %v105, %v109
    %v176 = vunpack.c.l.b16 %v37
    %v177 = vunpack.c.l.b16 %v38
    %v178 = vunpack.c.l.b16 %v39
    %v179 = vunpack.c.l.b16 %v40
    %v180 = vunpack.c.l.b16 %v41
    %v181 = vunpack.c.l.b16 %v42
    %v182 = vunpack.c.l.b16 %v43
    %v183 = vunpack.c.l.b16 %v44
    %v184 = vunpack.c.l.b16 %v45
    %v185 = vunpack.c.l.b16 %v46
    %v186 = vunpack.c.l.b16 %v47
    %v187 = vunpack.c.l.b16 %v48
    %v188 = vunpack.c.l.b16 %v49
    %v189 = vunpack.c.l.b16 %v50
    %v190 = vunpack.c.l.b16 %v51
    %v191 = vunpack.c.l.b16 %v52
    %v192 = vunpack.c.l.b16 %v53
    %v193 = vunpack.c.l.b16 %v54
    %v194 = vunpack.c.l.b16 %v55
    %v195 = vunpack.c.l.b16 %v56
    %v196 = vunpack.c.l.b16 %v57
    %v197 = vunpack.c.l.b16 %v58
    %v198 = vunpack.c.l.b16 %v59
    %v199 = vunpack.c.l.b16 %v60
    %v200 = vunpack.c.l.b16 %v61
    %v201 = vunpack.c.l.b16 %v62
    %v202 = vunpack.c.l.b16 %v63
    %v203 = vunpack.c.l.b16 %v64
    %v204 = vunpack.c.l.b16 %v65
    %v205 = vunpack.c.l.b16 %v66
    %v206 = vunpack.c.l.b16 %v67
    %v207 = vunpack.c.l.b16 %v68
    %v208 = vunpack.c.l.b16 %v69
    %v209 = vunpack.c.l.b16 %v70
    %v210 = vunpack.c.l.b16 %v71
    %v211 = vunpack.c.l.b16 %v72
    %v212 = vunpack.c.l.b16 %v73
    %v213 = vunpack.c.l.b16 %v74
    %v214 = vunpack.c.l.b16 %v75
    %v215 = vunpack.c.l.b16 %v76
    %v216 = vunpack.c.l.b16 %v77
    %v217 = vunpack.c.l.b16 %v78
    %v218 = vunpack.c.l.b16 %v79
    %v219 = vunpack.c.l.b16 %v80
    %v220 = vunpack.c.l.b16 %v81
    %v221 = vunpack.c.l.b16 %v82
    %v222 = vunpack.c.l.b16 %v83
    %v223 = vunpack.c.l.b16 %v84
    %v224 = vunpack.c.l.b16 %v85
    %v225 = vunpack.c.l.b16 %v86
    %v226 = vunpack.c.l.b16 %v87
    %v227 = vunpack.c.l.b16 %v88
    %v228 = vunpack.c.l.b16 %v89
    %v229 = vunpack.c.l.b16 %v90
    %v230 = vunpack.c.l.b16 %v91
    %v231 = vunpack.c.l.b16 %v92
    %v232 = vunpack.c.l.b16 %v93
    %v233 = vunpack.c.l.b16 %v94
    %v234 = vunpack.c.l.b16 %v95
    %v235 = vunpack.c.l.b16 %v96
    %v236 = vunpack.c.l.b16 %v97
    %v237 = vunpack.c.l.b16 %v98
    %v238 = vunpack.c.l.b16 %v99
    %v239 = vunpack.c.l.b16 %v100
    %v240 = vpack.c.b16 %v177, %v176
    %v241 = vpack.c.b16 %v179, %v178
    %v242 = vpack.c.b16 %v181, %v180
    %v243 = vpack.c.b16 %v183, %v182
    %v244 = vpack.c.b16 %v185, %v184
    %v245 = vpack.c.b16 %v187, %v186
    %v246 = vpack.c.b16 %v189, %v188
    %v247 = vpack.c.b16 %v191, %v190
    %v248 = vpack.c.b16 %v193, %v192
    %v249 = vpack.c.b16 %v195, %v194
    %v250 = vpack.c.b16 %v197, %v196
    %v251 = vpack.c.b16 %v199, %v198
    %v252 = vpack.c.b16 %v201, %v200
    %v253 = vpack.c.b16 %v203, %v202
    %v254 = vpack.c.b16 %v205, %v204
    %v255 = vpack.c.b16 %v207, %v206
    %v256 = vpack.c.b16 %v209, %v208
    %v257 = vpack.c.b16 %v211, %v210
    %v258 = vpack.c.b16 %v213, %v212
    %v259 = vpack.c.b16 %v215, %v214
    %v260 = vpack.c.b16 %v217, %v216
    %v261 = vpack.c.b16 %v219, %v218
    %v262 = vpack.c.b16 %v221, %v220
    %v263 = vpack.c.b16 %v223, %v222
    %v264 = vpack.c.b16 %v225, %v224
    %v265 = vpack.c.b16 %v227, %v226
    %v266 = vpack.c.b16 %v229, %v228
    %v267 = vpack.c.b16 %v231, %v230
    %v268 = vpack.c.b16 %v233, %v232
    %v269 = vpack.c.b16 %v235, %v234
    %v270 = vpack.c.b16 %v237, %v236
    %v271 = vpack.c.b16 %v239, %v238
    %v276 = vunpack.c.l.b16 %v101
    %v277 = vunpack.c.l.b16 %v102
    %v278 = vunpack.c.l.b16 %v103
    %v279 = vunpack.c.l.b16 %v104
    %v280 = vpack.c.b16 %v277, %v276
    %v281 = vpack.c.b16 %v279, %v278
    %vm284 = vcmask 261120
    %v286 = vsel %vm284, %v240, 0
    %v289 = vsel %vm284, %v241, 0
    %v292 = vsel %vm284, %v242, 0
    %v295 = vsel %vm284, %v243, 0
    %v298 = vsel %vm284, %v244, 0
    %v301 = vsel %vm284, %v245, 0
    %v304 = vsel %vm284, %v246, 0
    %v307 = vsel %vm284, %v247, 0
    %v310 = vsel %vm284, %v248, 0
    %v313 = vsel %vm284, %v249, 0
    %v316 = vsel %vm284, %v250, 0
    %v319 = vsel %vm284, %v251, 0
    %v322 = vsel %vm284, %v252, 0
    %v325 = vsel %vm284, %v253, 0
    %v328 = vsel %vm284, %v254, 0
    %v331 = vsel %vm284, %v255, 0
    %v334 = vsel %vm284, %v256, 0
    %v337 = vsel %vm284, %v257, 0
    %v340 = vsel %vm284, %v258, 0
    %v343 = vsel %vm284, %v259, 0
    %v346 = vsel %vm284, %v260, 0
    %v349 = vsel %vm284, %v261, 0
    %v352 = vsel %vm284, %v262, 0
    %v355 = vsel %vm284, %v263, 0
    %v358 = vsel %vm284, %v264, 0
    %v361 = vsel %vm284, %v265, 0
    %v364 = vsel %vm284, %v266, 0
    %v367 = vsel %vm284, %v267, 0
    %v370 = vsel %vm284, %v268, 0
    %v373 = vsel %vm284, %v269, 0
    %v376 = vsel %vm284, %v270, 0
    %v379 = vsel %vm284, %v271, 0
    %381 = vmatprep.subr.bf16.mxu0 0
    %382 = vmatpush1.bf16.msra.mxu0 %v280
    %383 = vmatprep.subr.bf16.mxu0 0
    %384 = vmatpush1.bf16.msra.mxu0 %v281
    %385 = vmatprep.subr.bf16.mxu0 0
    %386 = vmatpush1.bf16.msra.mxu0 0
    %387 = vmatprep.subr.bf16.mxu0 0
    %388 = vmatpush1.bf16.msra.mxu0 0
    %389 = vmatprep.subr.bf16.mxu0 0
    %390 = vmatpush1.bf16.msra.mxu0 0
    %391 = vmatprep.subr.bf16.mxu0 0
    %392 = vmatpush1.bf16.msra.mxu0 0
    %393 = vmatprep.subr.bf16.mxu0 0
    %394 = vmatpush1.bf16.msra.mxu0 0
    %395 = vmatprep.subr.bf16.mxu0 0
    %396 = vmatpush1.bf16.msra.mxu0 0
    %397 = vmatprep.subr.bf16.mxu0 0
    %398 = vmatpush1.bf16.msra.mxu0 0
    %399 = vmatprep.subr.bf16.mxu0 0
    %400 = vmatpush1.bf16.msra.mxu0 0
    %401 = vmatprep.subr.bf16.mxu0 0
    %402 = vmatpush1.bf16.msra.mxu0 0
    %403 = vmatprep.subr.bf16.mxu0 0
    %404 = vmatpush1.bf16.msra.mxu0 0
    %405 = vmatprep.subr.bf16.mxu0 0
    %406 = vmatpush1.bf16.msra.mxu0 0
    %407 = vmatprep.subr.bf16.mxu0 0
    %408 = vmatpush1.bf16.msra.mxu0 0
    %409 = vmatprep.subr.bf16.mxu0 0
    %410 = vmatpush1.bf16.msra.mxu0 0
    %411 = vmatprep.subr.bf16.mxu0 0
    %412 = vmatpush1.bf16.msra.mxu0 0
    %413 = vmatprep.mubr.bf16.mxu0 0
    %414 = vmatmul.mubr.bf16.gmra.mrb[0].mxu0 %v286
    %v415 = vpop.f32.mrb[0].mxu0
    %v416 = vadd.f32 %v110, %v415
    %v417 = vpop.f32.mrb[0].mxu0
    %v418 = vpop.f32.mrb[0].mxu0
    %v419 = vadd.f32 %v110, %v418
    %v420 = vpop.f32.mrb[0].mxu0
    %421 = vmatprep.mubr.bf16.mxu0 0
    %422 = vmatmul.mubr.bf16.gmra.mrb[0].mxu0 %v289
    %v423 = vpop.f32.mrb[0].mxu0
    %v424 = vadd.f32 %v110, %v423
    %v425 = vpop.f32.mrb[0].mxu0
    %v426 = vpop.f32.mrb[0].mxu0
    %v427 = vadd.f32 %v110, %v426
    %v428 = vpop.f32.mrb[0].mxu0
    %429 = vmatprep.mubr.bf16.mxu0 0
    %430 = vmatmul.mubr.bf16.gmra.mrb[0].mxu0 %v292
    %v431 = vpop.f32.mrb[0].mxu0
    %v432 = vadd.f32 %v110, %v431
    %v433 = vpop.f32.mrb[0].mxu0
    %v434 = vpop.f32.mrb[0].mxu0
    %v435 = vadd.f32 %v110, %v434
    %v436 = vpop.f32.mrb[0].mxu0
    %437 = vmatprep.mubr.bf16.mxu0 0
    %438 = vmatmul.mubr.bf16.gmra.mrb[0].mxu0 %v295
    %v439 = vpop.f32.mrb[0].mxu0
    %v440 = vadd.f32 %v110, %v439
    %v441 = vpop.f32.mrb[0].mxu0
    %v442 = vpop.f32.mrb[0].mxu0
    %v443 = vadd.f32 %v110, %v442
    %v444 = vpop.f32.mrb[0].mxu0
    %445 = vmatprep.mubr.bf16.mxu0 0
    %446 = vmatmul.mubr.bf16.gmra.mrb[0].mxu0 %v298
    %v447 = vpop.f32.mrb[0].mxu0
    %v448 = vadd.f32 %v110, %v447
    %v449 = vpop.f32.mrb[0].mxu0
    %v450 = vpop.f32.mrb[0].mxu0
    %v451 = vadd.f32 %v110, %v450
    %v452 = vpop.f32.mrb[0].mxu0
    %453 = vmatprep.mubr.bf16.mxu0 0
    %454 = vmatmul.mubr.bf16.gmra.mrb[0].mxu0 %v301
    %v455 = vpop.f32.mrb[0].mxu0
    %v456 = vadd.f32 %v110, %v455
    %v457 = vpop.f32.mrb[0].mxu0
    %v458 = vpop.f32.mrb[0].mxu0
    %v459 = vadd.f32 %v110, %v458
    %v460 = vpop.f32.mrb[0].mxu0
    %461 = vmatprep.mubr.bf16.mxu0 0
    %462 = vmatmul.mubr.bf16.gmra.mrb[0].mxu0 %v304
    %v463 = vpop.f32.mrb[0].mxu0
    %v464 = vadd.f32 %v110, %v463
    %v465 = vpop.f32.mrb[0].mxu0
    %v466 = vpop.f32.mrb[0].mxu0
    %v467 = vadd.f32 %v110, %v466
    %v468 = vpop.f32.mrb[0].mxu0
    %469 = vmatprep.mubr.bf16.mxu0 0
    %470 = vmatmul.mubr.bf16.gmra.mrb[0].mxu0 %v307
    %v471 = vpop.f32.mrb[0].mxu0
    %v472 = vadd.f32 %v110, %v471
    %v473 = vpop.f32.mrb[0].mxu0
    %v474 = vpop.f32.mrb[0].mxu0
    %v475 = vadd.f32 %v110, %v474
    %v476 = vpop.f32.mrb[0].mxu0
    %477 = vmatprep.mubr.bf16.mxu0 0
    %478 = vmatmul.mubr.bf16.gmra.mrb[0].mxu0 %v310
    %v479 = vpop.f32.mrb[0].mxu0
    %v480 = vadd.f32 %v110, %v479
    %v481 = vpop.f32.mrb[0].mxu0
    %v482 = vpop.f32.mrb[0].mxu0
    %v483 = vadd.f32 %v110, %v482
    %v484 = vpop.f32.mrb[0].mxu0
    %485 = vmatprep.mubr.bf16.mxu0 0
    %486 = vmatmul.mubr.bf16.gmra.mrb[0].mxu0 %v313
    %v487 = vpop.f32.mrb[0].mxu0
    %v488 = vadd.f32 %v110, %v487
    %v489 = vpop.f32.mrb[0].mxu0
    %v490 = vpop.f32.mrb[0].mxu0
    %v491 = vadd.f32 %v110, %v490
    %v492 = vpop.f32.mrb[0].mxu0
    %493 = vmatprep.mubr.bf16.mxu0 0
    %494 = vmatmul.mubr.bf16.gmra.mrb[0].mxu0 %v316
    %v495 = vpop.f32.mrb[0].mxu0
    %v496 = vadd.f32 %v110, %v495
    %v497 = vpop.f32.mrb[0].mxu0
    %v498 = vpop.f32.mrb[0].mxu0
    %v499 = vadd.f32 %v110, %v498
    %v500 = vpop.f32.mrb[0].mxu0
    %501 = vmatprep.mubr.bf16.mxu0 0
    %502 = vmatmul.mubr.bf16.gmra.mrb[0].mxu0 %v319
    %v503 = vpop.f32.mrb[0].mxu0
    %v504 = vadd.f32 %v110, %v503
    %v505 = vpop.f32.mrb[0].mxu0
    %v506 = vpop.f32.mrb[0].mxu0
    %v507 = vadd.f32 %v110, %v506
    %v508 = vpop.f32.mrb[0].mxu0
    %509 = vmatprep.mubr.bf16.mxu0 0
    %510 = vmatmul.mubr.bf16.gmra.mrb[0].mxu0 %v322
    %v511 = vpop.f32.mrb[0].mxu0
    %v512 = vadd.f32 %v110, %v511
    %v513 = vpop.f32.mrb[0].mxu0
    %v514 = vpop.f32.mrb[0].mxu0
    %v515 = vadd.f32 %v110, %v514
    %v516 = vpop.f32.mrb[0].mxu0
    %517 = vmatprep.mubr.bf16.mxu0 0
    %518 = vmatmul.mubr.bf16.gmra.mrb[0].mxu0 %v325
    %v519 = vpop.f32.mrb[0].mxu0
    %v520 = vadd.f32 %v110, %v519
    %v521 = vpop.f32.mrb[0].mxu0
    %v522 = vpop.f32.mrb[0].mxu0
    %v523 = vadd.f32 %v110, %v522
    %v524 = vpop.f32.mrb[0].mxu0
    %525 = vmatprep.mubr.bf16.mxu0 0
    %526 = vmatmul.mubr.bf16.gmra.mrb[0].mxu0 %v328
    %v527 = vpop.f32.mrb[0].mxu0
    %v528 = vadd.f32 %v110, %v527
    %v529 = vpop.f32.mrb[0].mxu0
    %v530 = vpop.f32.mrb[0].mxu0
    %v531 = vadd.f32 %v110, %v530
    %v532 = vpop.f32.mrb[0].mxu0
    %533 = vmatprep.mubr.bf16.mxu0 0
    %534 = vmatmul.mubr.bf16.gmra.mrb[0].mxu0 %v331
    %v535 = vpop.f32.mrb[0].mxu0
    %v536 = vadd.f32 %v110, %v535
    %v537 = vpop.f32.mrb[0].mxu0
    %v538 = vpop.f32.mrb[0].mxu0
    %v539 = vadd.f32 %v110, %v538
    %v540 = vpop.f32.mrb[0].mxu0
    %541 = vmatprep.mubr.bf16.mxu0 0
    %542 = vmatmul.mubr.bf16.gmra.mrb[0].mxu0 %v334
    %v543 = vpop.f32.mrb[0].mxu0
    %v544 = vadd.f32 %v110, %v543
    %v545 = vpop.f32.mrb[0].mxu0
    %v546 = vpop.f32.mrb[0].mxu0
    %v547 = vadd.f32 %v110, %v546
    %v548 = vpop.f32.mrb[0].mxu0
    %549 = vmatprep.mubr.bf16.mxu0 0
    %550 = vmatmul.mubr.bf16.gmra.mrb[0].mxu0 %v337
    %v551 = vpop.f32.mrb[0].mxu0
    %v552 = vadd.f32 %v110, %v551
    %v553 = vpop.f32.mrb[0].mxu0
    %v554 = vpop.f32.mrb[0].mxu0
    %v555 = vadd.f32 %v110, %v554
    %v556 = vpop.f32.mrb[0].mxu0
    %557 = vmatprep.mubr.bf16.mxu0 0
    %558 = vmatmul.mubr.bf16.gmra.mrb[0].mxu0 %v340
    %v559 = vpop.f32.mrb[0].mxu0
    %v560 = vadd.f32 %v110, %v559
    %v561 = vpop.f32.mrb[0].mxu0
    %v562 = vpop.f32.mrb[0].mxu0
    %v563 = vadd.f32 %v110, %v562
    %v564 = vpop.f32.mrb[0].mxu0
    %565 = vmatprep.mubr.bf16.mxu0 0
    %566 = vmatmul.mubr.bf16.gmra.mrb[0].mxu0 %v343
    %v567 = vpop.f32.mrb[0].mxu0
    %v568 = vadd.f32 %v110, %v567
    %v569 = vpop.f32.mrb[0].mxu0
    %v570 = vpop.f32.mrb[0].mxu0
    %v571 = vadd.f32 %v110, %v570
    %v572 = vpop.f32.mrb[0].mxu0
    %573 = vmatprep.mubr.bf16.mxu0 0
    %574 = vmatmul.mubr.bf16.gmra.mrb[0].mxu0 %v346
    %v575 = vpop.f32.mrb[0].mxu0
    %v576 = vadd.f32 %v110, %v575
    %v577 = vpop.f32.mrb[0].mxu0
    %v578 = vpop.f32.mrb[0].mxu0
    %v579 = vadd.f32 %v110, %v578
    %v580 = vpop.f32.mrb[0].mxu0
    %581 = vmatprep.mubr.bf16.mxu0 0
    %582 = vmatmul.mubr.bf16.gmra.mrb[0].mxu0 %v349
    %v583 = vpop.f32.mrb[0].mxu0
    %v584 = vadd.f32 %v110, %v583
    %v585 = vpop.f32.mrb[0].mxu0
    %v586 = vpop.f32.mrb[0].mxu0
    %v587 = vadd.f32 %v110, %v586
    %v588 = vpop.f32.mrb[0].mxu0
    %589 = vmatprep.mubr.bf16.mxu0 0
    %590 = vmatmul.mubr.bf16.gmra.mrb[0].mxu0 %v352
    %v591 = vpop.f32.mrb[0].mxu0
    %v592 = vadd.f32 %v110, %v591
    %v593 = vpop.f32.mrb[0].mxu0
    %v594 = vpop.f32.mrb[0].mxu0
    %v595 = vadd.f32 %v110, %v594
    %v596 = vpop.f32.mrb[0].mxu0
    %597 = vmatprep.mubr.bf16.mxu0 0
    %598 = vmatmul.mubr.bf16.gmra.mrb[0].mxu0 %v355
    %v599 = vpop.f32.mrb[0].mxu0
    %v600 = vadd.f32 %v110, %v599
    %v601 = vpop.f32.mrb[0].mxu0
    %v602 = vpop.f32.mrb[0].mxu0
    %v603 = vadd.f32 %v110, %v602
    %v604 = vpop.f32.mrb[0].mxu0
    %605 = vmatprep.mubr.bf16.mxu0 0
    %606 = vmatmul.mubr.bf16.gmra.mrb[0].mxu0 %v358
    %v607 = vpop.f32.mrb[0].mxu0
    %v608 = vadd.f32 %v110, %v607
    %v609 = vpop.f32.mrb[0].mxu0
    %v610 = vpop.f32.mrb[0].mxu0
    %v611 = vadd.f32 %v110, %v610
    %v612 = vpop.f32.mrb[0].mxu0
    %613 = vmatprep.mubr.bf16.mxu0 0
    %614 = vmatmul.mubr.bf16.gmra.mrb[0].mxu0 %v361
    %v615 = vpop.f32.mrb[0].mxu0
    %v616 = vadd.f32 %v110, %v615
    %v617 = vpop.f32.mrb[0].mxu0
    %v618 = vpop.f32.mrb[0].mxu0
    %v619 = vadd.f32 %v110, %v618
    %v620 = vpop.f32.mrb[0].mxu0
    %621 = vmatprep.mubr.bf16.mxu0 0
    %622 = vmatmul.mubr.bf16.gmra.mrb[0].mxu0 %v364
    %v623 = vpop.f32.mrb[0].mxu0
    %v624 = vadd.f32 %v110, %v623
    %v625 = vpop.f32.mrb[0].mxu0
    %v626 = vpop.f32.mrb[0].mxu0
    %v627 = vadd.f32 %v110, %v626
    %v628 = vpop.f32.mrb[0].mxu0
    %629 = vmatprep.mubr.bf16.mxu0 0
    %630 = vmatmul.mubr.bf16.gmra.mrb[0].mxu0 %v367
    %v631 = vpop.f32.mrb[0].mxu0
    %v632 = vadd.f32 %v110, %v631
    %v633 = vpop.f32.mrb[0].mxu0
    %v634 = vpop.f32.mrb[0].mxu0
    %v635 = vadd.f32 %v110, %v634
    %v636 = vpop.f32.mrb[0].mxu0
    %637 = vmatprep.mubr.bf16.mxu0 0
    %638 = vmatmul.mubr.bf16.gmra.mrb[0].mxu0 %v370
    %v639 = vpop.f32.mrb[0].mxu0
    %v640 = vadd.f32 %v110, %v639
    %v641 = vpop.f32.mrb[0].mxu0
    %v642 = vpop.f32.mrb[0].mxu0
    %v643 = vadd.f32 %v110, %v642
    %v644 = vpop.f32.mrb[0].mxu0
    %645 = vmatprep.mubr.bf16.mxu0 0
    %646 = vmatmul.mubr.bf16.gmra.mrb[0].mxu0 %v373
    %v647 = vpop.f32.mrb[0].mxu0
    %v648 = vadd.f32 %v110, %v647
    %v649 = vpop.f32.mrb[0].mxu0
    %v650 = vpop.f32.mrb[0].mxu0
    %v651 = vadd.f32 %v110, %v650
    %v652 = vpop.f32.mrb[0].mxu0
    %653 = vmatprep.mubr.bf16.mxu0 0
    %654 = vmatmul.mubr.bf16.gmra.mrb[0].mxu0 %v376
    %v655 = vpop.f32.mrb[0].mxu0
    %v656 = vadd.f32 %v110, %v655
    %v657 = vpop.f32.mrb[0].mxu0
    %v658 = vpop.f32.mrb[0].mxu0
    %v659 = vadd.f32 %v110, %v658
    %v660 = vpop.f32.mrb[0].mxu0
    %661 = vmatprep.mubr.bf16.mxu0 0
    %662 = vmatmul.mubr.bf16.gmra.mrb[0].mxu0 %v379
    %v663 = vpop.f32.mrb[0].mxu0
    %v664 = vadd.f32 %v110, %v663
    %v665 = vpop.f32.mrb[0].mxu0
    %v666 = vpop.f32.mrb[0].mxu0
    %v667 = vadd.f32 %v110, %v666
    %v668 = vpop.f32.mrb[0].mxu0
    %669 = vdwg.mxu0
    %v670 = vmax.f32 %v416, 0.0
    %v671 = vmax.f32 %v419, 0.0
    %v672 = vmax.f32 %v424, 0.0
    %v673 = vmax.f32 %v427, 0.0
    %v674 = vmax.f32 %v432, 0.0
    %v675 = vmax.f32 %v435, 0.0
    %v676 = vmax.f32 %v440, 0.0
    %v677 = vmax.f32 %v443, 0.0
    %v678 = vmax.f32 %v448, 0.0
    %v679 = vmax.f32 %v451, 0.0
    %v680 = vmax.f32 %v456, 0.0
    %v681 = vmax.f32 %v459, 0.0
    %v682 = vmax.f32 %v464, 0.0
    %v683 = vmax.f32 %v467, 0.0
    %v684 = vmax.f32 %v472, 0.0
    %v685 = vmax.f32 %v475, 0.0
    %v686 = vmax.f32 %v480, 0.0
    %v687 = vmax.f32 %v483, 0.0
    %v688 = vmax.f32 %v488, 0.0
    %v689 = vmax.f32 %v491, 0.0
    %v690 = vmax.f32 %v496, 0.0
    %v691 = vmax.f32 %v499, 0.0
    %v692 = vmax.f32 %v504, 0.0
    %v693 = vmax.f32 %v507, 0.0
    %v694 = vmax.f32 %v512, 0.0
    %v695 = vmax.f32 %v515, 0.0
    %v696 = vmax.f32 %v520, 0.0
    %v697 = vmax.f32 %v523, 0.0
    %v698 = vmax.f32 %v528, 0.0
    %v699 = vmax.f32 %v531, 0.0
    %v700 = vmax.f32 %v536, 0.0
    %v701 = vmax.f32 %v539, 0.0
    %v702 = vmax.f32 %v544, 0.0
    %v703 = vmax.f32 %v547, 0.0
    %v704 = vmax.f32 %v552, 0.0
    %v705 = vmax.f32 %v555, 0.0
    %v706 = vmax.f32 %v560, 0.0
    %v707 = vmax.f32 %v563, 0.0
    %v708 = vmax.f32 %v568, 0.0
    %v709 = vmax.f32 %v571, 0.0
    %v710 = vmax.f32 %v576, 0.0
    %v711 = vmax.f32 %v579, 0.0
    %v712 = vmax.f32 %v584, 0.0
    %v713 = vmax.f32 %v587, 0.0
    %v714 = vmax.f32 %v592, 0.0
    %v715 = vmax.f32 %v595, 0.0
    %v716 = vmax.f32 %v600, 0.0
    %v717 = vmax.f32 %v603, 0.0
    %v718 = vmax.f32 %v608, 0.0
    %v719 = vmax.f32 %v611, 0.0
    %v720 = vmax.f32 %v616, 0.0
    %v721 = vmax.f32 %v619, 0.0
    %v722 = vmax.f32 %v624, 0.0
    %v723 = vmax.f32 %v627, 0.0
    %v724 = vmax.f32 %v632, 0.0
    %v725 = vmax.f32 %v635, 0.0
    %v726 = vmax.f32 %v640, 0.0
    %v727 = vmax.f32 %v643, 0.0
    %v728 = vmax.f32 %v648, 0.0
    %v729 = vmax.f32 %v651, 0.0
    %v730 = vmax.f32 %v656, 0.0
    %v731 = vmax.f32 %v659, 0.0
    %v732 = vmax.f32 %v664, 0.0
    %v733 = vmax.f32 %v667, 0.0
    %v734 = vadd.f32 %v670, %v671
    %v735 = vadd.f32 %v734, %v672
    %v736 = vadd.f32 %v735, %v673
    %v737 = vadd.f32 %v736, %v674
    %v738 = vadd.f32 %v737, %v675
    %v739 = vadd.f32 %v738, %v676
    %v740 = vadd.f32 %v739, %v677
    %v741 = vadd.f32 %v740, %v678
    %v742 = vadd.f32 %v741, %v679
    %v743 = vadd.f32 %v742, %v680
    %v744 = vadd.f32 %v743, %v681
    %v745 = vadd.f32 %v744, %v682
    %v746 = vadd.f32 %v745, %v683
    %v747 = vadd.f32 %v746, %v684
    %v748 = vadd.f32 %v747, %v685
    %v749 = vadd.f32 %v748, %v686
    %v750 = vadd.f32 %v749, %v687
    %v751 = vadd.f32 %v750, %v688
    %v752 = vadd.f32 %v751, %v689
    %v753 = vadd.f32 %v752, %v690
    %v754 = vadd.f32 %v753, %v691
    %v755 = vadd.f32 %v754, %v692
    %v756 = vadd.f32 %v755, %v693
    %v757 = vadd.f32 %v756, %v694
    %v758 = vadd.f32 %v757, %v695
    %v759 = vadd.f32 %v758, %v696
    %v760 = vadd.f32 %v759, %v697
    %v761 = vadd.f32 %v760, %v698
    %v762 = vadd.f32 %v761, %v699
    %v763 = vadd.f32 %v762, %v700
    %v764 = vadd.f32 %v763, %v701
    %v765 = vrot.slane %v764, 4
    %v766 = vadd.f32 %v764, %v765
    %v767 = vrot.slane %v766, 2
    %v768 = vadd.f32 %v766, %v767
    %v769 = vrot.slane %v768, 1
    %v770 = vadd.f32 %v768, %v769
    %v771 = vadd.f32 %v702, %v703
    %v772 = vadd.f32 %v771, %v704
    %v773 = vadd.f32 %v772, %v705
    %v774 = vadd.f32 %v773, %v706
    %v775 = vadd.f32 %v774, %v707
    %v776 = vadd.f32 %v775, %v708
    %v777 = vadd.f32 %v776, %v709
    %v778 = vadd.f32 %v777, %v710
    %v779 = vadd.f32 %v778, %v711
    %v780 = vadd.f32 %v779, %v712
    %v781 = vadd.f32 %v780, %v713
    %v782 = vadd.f32 %v781, %v714
    %v783 = vadd.f32 %v782, %v715
    %v784 = vadd.f32 %v783, %v716
    %v785 = vadd.f32 %v784, %v717
    %v786 = vadd.f32 %v785, %v718
    %v787 = vadd.f32 %v786, %v719
    %v788 = vadd.f32 %v787, %v720
    %v789 = vadd.f32 %v788, %v721
    %v790 = vadd.f32 %v789, %v722
    %v791 = vadd.f32 %v790, %v723
    %v792 = vadd.f32 %v791, %v724
    %v793 = vadd.f32 %v792, %v725
    %v794 = vadd.f32 %v793, %v726
    %v795 = vadd.f32 %v794, %v727
    %v796 = vadd.f32 %v795, %v728
    %v797 = vadd.f32 %v796, %v729
    %v798 = vadd.f32 %v797, %v730
    %v799 = vadd.f32 %v798, %v731
    %v800 = vadd.f32 %v799, %v732
    %v801 = vadd.f32 %v800, %v733
    %v802 = vrot.slane %v801, 4
    %v803 = vadd.f32 %v801, %v802
    %v804 = vrot.slane %v803, 2
    %v805 = vadd.f32 %v803, %v804
    %v806 = vrot.slane %v805, 1
    %v807 = vadd.f32 %v805, %v806
    %v808 = vmul.f32 %v770, 0.00390625
    %v809 = vmul.f32 %v807, 0.00390625
    %v810 = vpack.c.bf16 %v808, %v808
    %v811 = vpack.c.bf16 %v809, %v809
    %v812 = vld [vmem:[%s3] sm:$0xf]
    %v813 = vld [vmem:[%s3 + $0x4] sm:$0xf]
    %v814 = vld [vmem:[%s3 + $0x8] sm:$0xf]
    %v815 = vld [vmem:[%s3 + $0xc] sm:$0xf]
    %v816 = vld [vmem:[%s3 + $0x10] sm:$0xf]
    %v817 = vld [vmem:[%s3 + $0x14] sm:$0xf]
    %v818 = vld [vmem:[%s3 + $0x18] sm:$0xf]
    %v819 = vld [vmem:[%s3 + $0x1c] sm:$0xf]
    %v820 = vld [vmem:[%s3 + $0x20] sm:$0xf]
    %v821 = vld [vmem:[%s3 + $0x24] sm:$0xf]
    %v822 = vld [vmem:[%s3 + $0x28] sm:$0xf]
    %v823 = vld [vmem:[%s3 + $0x2c] sm:$0xf]
    %v824 = vld [vmem:[%s3 + $0x30] sm:$0xf]
    %v825 = vld [vmem:[%s3 + $0x34] sm:$0xf]
    %v826 = vld [vmem:[%s3 + $0x38] sm:$0xf]
    %v827 = vld [vmem:[%s3 + $0x3c] sm:$0xf]
    %v828 = vld [vmem:[%s4] sm:$0x1]
    %v830 = vlaneseq
    %v831 = vshrl.u32 %v830, 7
    %v832 = vsub.s32 0, %v831
    %v833 = vrot.slane %v828, %v832
    %v837 = vunpack.c.l.b16 %v810
    %v838 = vunpack.c.l.b16 %v811
    %vm839 = vcmask 1041409
    %v840 = vsel %vm839, %v838, %v837
    %v841 = vpack.c.b16 %v840, %v840
    %v859 = vunpack.c.l.b16 %v812
    %v860 = vunpack.c.l.b16 %v813
    %v861 = vunpack.c.l.b16 %v814
    %v862 = vunpack.c.l.b16 %v815
    %v863 = vunpack.c.l.b16 %v816
    %v864 = vunpack.c.l.b16 %v817
    %v865 = vunpack.c.l.b16 %v818
    %v866 = vunpack.c.l.b16 %v819
    %v867 = vunpack.c.l.b16 %v820
    %v868 = vunpack.c.l.b16 %v821
    %v869 = vunpack.c.l.b16 %v822
    %v870 = vunpack.c.l.b16 %v823
    %v871 = vunpack.c.l.b16 %v824
    %v872 = vunpack.c.l.b16 %v825
    %v873 = vunpack.c.l.b16 %v826
    %v874 = vunpack.c.l.b16 %v827
    %v875 = vpack.c.b16 %v860, %v859
    %v876 = vpack.c.b16 %v862, %v861
    %v877 = vpack.c.b16 %v864, %v863
    %v878 = vpack.c.b16 %v866, %v865
    %v879 = vpack.c.b16 %v868, %v867
    %v880 = vpack.c.b16 %v870, %v869
    %v881 = vpack.c.b16 %v872, %v871
    %v882 = vpack.c.b16 %v874, %v873
    %891 = vmatprep.subr.bf16.mxu0 0
    %892 = vmatpush1.bf16.msra.mxu0 %v875
    %893 = vmatprep.subr.bf16.mxu0 0
    %894 = vmatpush1.bf16.msra.mxu0 %v876
    %895 = vmatprep.subr.bf16.mxu0 0
    %896 = vmatpush1.bf16.msra.mxu0 %v877
    %897 = vmatprep.subr.bf16.mxu0 0
    %898 = vmatpush1.bf16.msra.mxu0 %v878
    %899 = vmatprep.subr.bf16.mxu0 0
    %900 = vmatpush1.bf16.msra.mxu0 %v879
    %901 = vmatprep.subr.bf16.mxu0 0
    %902 = vmatpush1.bf16.msra.mxu0 %v880
    %903 = vmatprep.subr.bf16.mxu0 0
    %904 = vmatpush1.bf16.msra.mxu0 %v881
    %905 = vmatprep.subr.bf16.mxu0 0
    %906 = vmatpush1.bf16.msra.mxu0 %v882
    %907 = vmatprep.subr.bf16.mxu0 0
    %908 = vmatpush1.bf16.msra.mxu0 0
    %909 = vmatprep.subr.bf16.mxu0 0
    %910 = vmatpush1.bf16.msra.mxu0 0
    %911 = vmatprep.subr.bf16.mxu0 0
    %912 = vmatpush1.bf16.msra.mxu0 0
    %913 = vmatprep.subr.bf16.mxu0 0
    %914 = vmatpush1.bf16.msra.mxu0 0
    %915 = vmatprep.subr.bf16.mxu0 0
    %916 = vmatpush1.bf16.msra.mxu0 0
    %917 = vmatprep.subr.bf16.mxu0 0
    %918 = vmatpush1.bf16.msra.mxu0 0
    %919 = vmatprep.subr.bf16.mxu0 0
    %920 = vmatpush1.bf16.msra.mxu0 0
    %921 = vmatprep.subr.bf16.mxu0 0
    %922 = vmatpush1.bf16.msra.mxu0 0
    %923 = vmatprep.mubr.bf16.mxu0 0
    %924 = vmatmul.mubr.bf16.gmra.mrb[0].mxu0 %v841
    %v925 = vpop.f32.mrb[0].mxu0
    %v926 = vadd.f32 %v833, %v925
    %v927 = vpop.f32.mrb[0].mxu0
    %v928 = vpop.f32.mrb[0].mxu0
    %v929 = vpop.f32.mrb[0].mxu0
    %930 = vdwg.mxu0
    %v931 = vld [vmem:[%s5] sm:$0xff]
    %v932 = vld [vmem:[%s5 + $0x8] sm:$0xff]
    %v933 = vld [vmem:[%s5 + $0x10] sm:$0xff]
    %v934 = vld [vmem:[%s5 + $0x18] sm:$0xff]
    %v935 = vld [vmem:[%s5 + $0x20] sm:$0xff]
    %v936 = vld [vmem:[%s5 + $0x28] sm:$0xff]
    %v937 = vld [vmem:[%s5 + $0x30] sm:$0xff]
    %v938 = vld [vmem:[%s5 + $0x38] sm:$0xff]
    %v939 = vld [vmem:[%s5 + $0x40] sm:$0xff]
    %v940 = vld [vmem:[%s5 + $0x48] sm:$0xff]
    %v941 = vld [vmem:[%s5 + $0x50] sm:$0xff]
    %v942 = vld [vmem:[%s5 + $0x58] sm:$0xff]
    %v943 = vld [vmem:[%s5 + $0x60] sm:$0xff]
    %v944 = vld [vmem:[%s5 + $0x68] sm:$0xff]
    %v945 = vld [vmem:[%s5 + $0x70] sm:$0xff]
    %v946 = vld [vmem:[%s5 + $0x78] sm:$0xff]
    %v947 = vld [vmem:[%s5 + $0x80] sm:$0xff]
    %v948 = vld [vmem:[%s5 + $0x88] sm:$0xff]
    %v949 = vld [vmem:[%s5 + $0x90] sm:$0xff]
    %v950 = vld [vmem:[%s5 + $0x98] sm:$0xff]
    %v951 = vld [vmem:[%s5 + $0xa0] sm:$0xff]
    %v952 = vld [vmem:[%s5 + $0xa8] sm:$0xff]
    %v953 = vld [vmem:[%s5 + $0xb0] sm:$0xff]
    %v954 = vld [vmem:[%s5 + $0xb8] sm:$0xff]
    %v955 = vld [vmem:[%s5 + $0xc0] sm:$0xff]
    %v956 = vld [vmem:[%s5 + $0xc8] sm:$0xff]
    %v957 = vld [vmem:[%s5 + $0xd0] sm:$0xff]
    %v958 = vld [vmem:[%s5 + $0xd8] sm:$0xff]
    %v959 = vld [vmem:[%s5 + $0xe0] sm:$0xff]
    %v960 = vld [vmem:[%s5 + $0xe8] sm:$0xff]
    %v961 = vld [vmem:[%s5 + $0xf0] sm:$0xff]
    %v962 = vld [vmem:[%s5 + $0xf8] sm:$0xff]
    %v963 = vld [vmem:[%s5 + $0x100] sm:$0xff]
    %v964 = vld [vmem:[%s5 + $0x108] sm:$0xff]
    %v965 = vld [vmem:[%s5 + $0x110] sm:$0xff]
    %v966 = vld [vmem:[%s5 + $0x118] sm:$0xff]
    %v967 = vld [vmem:[%s5 + $0x120] sm:$0xff]
    %v968 = vld [vmem:[%s5 + $0x128] sm:$0xff]
    %v969 = vld [vmem:[%s5 + $0x130] sm:$0xff]
    %v970 = vld [vmem:[%s5 + $0x138] sm:$0xff]
    %v971 = vld [vmem:[%s5 + $0x140] sm:$0xff]
    %v972 = vld [vmem:[%s5 + $0x148] sm:$0xff]
    %v973 = vld [vmem:[%s5 + $0x150] sm:$0xff]
    %v974 = vld [vmem:[%s5 + $0x158] sm:$0xff]
    %v975 = vld [vmem:[%s5 + $0x160] sm:$0xff]
    %v976 = vld [vmem:[%s5 + $0x168] sm:$0xff]
    %v977 = vld [vmem:[%s5 + $0x170] sm:$0xff]
    %v978 = vld [vmem:[%s5 + $0x178] sm:$0xff]
    %v979 = vld [vmem:[%s5 + $0x180] sm:$0xff]
    %v980 = vld [vmem:[%s5 + $0x188] sm:$0xff]
    %v981 = vld [vmem:[%s5 + $0x190] sm:$0xff]
    %v982 = vld [vmem:[%s5 + $0x198] sm:$0xff]
    %v983 = vld [vmem:[%s5 + $0x1a0] sm:$0xff]
    %v984 = vld [vmem:[%s5 + $0x1a8] sm:$0xff]
    %v985 = vld [vmem:[%s5 + $0x1b0] sm:$0xff]
    %v986 = vld [vmem:[%s5 + $0x1b8] sm:$0xff]
    %v987 = vld [vmem:[%s5 + $0x1c0] sm:$0xff]
    %v988 = vld [vmem:[%s5 + $0x1c8] sm:$0xff]
    %v989 = vld [vmem:[%s5 + $0x1d0] sm:$0xff]
    %v990 = vld [vmem:[%s5 + $0x1d8] sm:$0xff]
    %v991 = vld [vmem:[%s5 + $0x1e0] sm:$0xff]
    %v992 = vld [vmem:[%s5 + $0x1e8] sm:$0xff]
    %v993 = vld [vmem:[%s5 + $0x1f0] sm:$0xff]
    %v994 = vld [vmem:[%s5 + $0x1f8] sm:$0xff]
    %v995 = vld [vmem:[%s6] sm:$0xf]
    %v996 = vld [vmem:[%s6 + $0x4] sm:$0xf]
    %v997 = vld [vmem:[%s6 + $0x8] sm:$0xf]
    %v998 = vld [vmem:[%s6 + $0xc] sm:$0xf]
    %v999 = vld [vmem:[%s6 + $0x10] sm:$0xf]
    %v1000 = vld [vmem:[%s6 + $0x14] sm:$0xf]
    %v1001 = vld [vmem:[%s6 + $0x18] sm:$0xf]
    %v1002 = vld [vmem:[%s6 + $0x1c] sm:$0xf]
    %v1003 = vld [vmem:[%s6 + $0x20] sm:$0xf]
    %v1004 = vld [vmem:[%s6 + $0x24] sm:$0xf]
    %v1005 = vld [vmem:[%s6 + $0x28] sm:$0xf]
    %v1006 = vld [vmem:[%s6 + $0x2c] sm:$0xf]
    %v1007 = vld [vmem:[%s6 + $0x30] sm:$0xf]
    %v1008 = vld [vmem:[%s6 + $0x34] sm:$0xf]
    %v1009 = vld [vmem:[%s6 + $0x38] sm:$0xf]
    %v1010 = vld [vmem:[%s6 + $0x3c] sm:$0xf]
    %v1011 = vld [vmem:[%s7] sm:$0x1]
    %v1013 = vlaneseq
    %v1014 = vshrl.u32 %v1013, 7
    %v1015 = vsub.s32 0, %v1014
    %v1016 = vrot.slane %v1011, %v1015
    %v1018 = vlaneseq
    %v1019 = vand.u32 %v1018, 127
    %v1020 = vld [vmem:[%s8] sm:$0x1]
    %vm1021 = vcmp.eq.s32.totalorder %v1019, 0
    %v1022 = vsel %vm1021, 1, 0
    %v1023 = vpack.c.bf16 %v926, %v926
    %v1088 = vunpack.c.l.b16 %v931
    %v1089 = vunpack.c.h.b16 %v931
    %v1090 = vunpack.c.l.b16 %v932
    %v1091 = vunpack.c.h.b16 %v932
    %v1092 = vunpack.c.l.b16 %v933
    %v1093 = vunpack.c.h.b16 %v933
    %v1094 = vunpack.c.l.b16 %v934
    %v1095 = vunpack.c.h.b16 %v934
    %v1096 = vunpack.c.l.b16 %v935
    %v1097 = vunpack.c.h.b16 %v935
    %v1098 = vunpack.c.l.b16 %v936
    %v1099 = vunpack.c.h.b16 %v936
    %v1100 = vunpack.c.l.b16 %v937
    %v1101 = vunpack.c.h.b16 %v937
    %v1102 = vunpack.c.l.b16 %v938
    %v1103 = vunpack.c.h.b16 %v938
    %v1104 = vunpack.c.l.b16 %v939
    %v1105 = vunpack.c.h.b16 %v939
    %v1106 = vunpack.c.l.b16 %v940
    %v1107 = vunpack.c.h.b16 %v940
    %v1108 = vunpack.c.l.b16 %v941
    %v1109 = vunpack.c.h.b16 %v941
    %v1110 = vunpack.c.l.b16 %v942
    %v1111 = vunpack.c.h.b16 %v942
    %v1112 = vunpack.c.l.b16 %v943
    %v1113 = vunpack.c.h.b16 %v943
    %v1114 = vunpack.c.l.b16 %v944
    %v1115 = vunpack.c.h.b16 %v944
    %v1116 = vunpack.c.l.b16 %v945
    %v1117 = vunpack.c.h.b16 %v945
    %v1118 = vunpack.c.l.b16 %v946
    %v1119 = vunpack.c.h.b16 %v946
    %v1120 = vunpack.c.l.b16 %v947
    %v1121 = vunpack.c.h.b16 %v947
    %v1122 = vunpack.c.l.b16 %v948
    %v1123 = vunpack.c.h.b16 %v948
    %v1124 = vunpack.c.l.b16 %v949
    %v1125 = vunpack.c.h.b16 %v949
    %v1126 = vunpack.c.l.b16 %v950
    %v1127 = vunpack.c.h.b16 %v950
    %v1128 = vunpack.c.l.b16 %v951
    %v1129 = vunpack.c.h.b16 %v951
    %v1130 = vunpack.c.l.b16 %v952
    %v1131 = vunpack.c.h.b16 %v952
    %v1132 = vunpack.c.l.b16 %v953
    %v1133 = vunpack.c.h.b16 %v953
    %v1134 = vunpack.c.l.b16 %v954
    %v1135 = vunpack.c.h.b16 %v954
    %v1136 = vunpack.c.l.b16 %v955
    %v1137 = vunpack.c.h.b16 %v955
    %v1138 = vunpack.c.l.b16 %v956
    %v1139 = vunpack.c.h.b16 %v956
    %v1140 = vunpack.c.l.b16 %v957
    %v1141 = vunpack.c.h.b16 %v957
    %v1142 = vunpack.c.l.b16 %v958
    %v1143 = vunpack.c.h.b16 %v958
    %v1144 = vunpack.c.l.b16 %v959
    %v1145 = vunpack.c.h.b16 %v959
    %v1146 = vunpack.c.l.b16 %v960
    %v1147 = vunpack.c.h.b16 %v960
    %v1148 = vunpack.c.l.b16 %v961
    %v1149 = vunpack.c.h.b16 %v961
    %v1150 = vunpack.c.l.b16 %v962
    %v1151 = vunpack.c.h.b16 %v962
    %v1152 = vunpack.c.l.b16 %v963
    %v1153 = vunpack.c.h.b16 %v963
    %v1154 = vunpack.c.l.b16 %v964
    %v1155 = vunpack.c.h.b16 %v964
    %v1156 = vunpack.c.l.b16 %v965
    %v1157 = vunpack.c.h.b16 %v965
    %v1158 = vunpack.c.l.b16 %v966
    %v1159 = vunpack.c.h.b16 %v966
    %v1160 = vunpack.c.l.b16 %v967
    %v1161 = vunpack.c.h.b16 %v967
    %v1162 = vunpack.c.l.b16 %v968
    %v1163 = vunpack.c.h.b16 %v968
    %v1164 = vunpack.c.l.b16 %v969
    %v1165 = vunpack.c.h.b16 %v969
    %v1166 = vunpack.c.l.b16 %v970
    %v1167 = vunpack.c.h.b16 %v970
    %v1168 = vunpack.c.l.b16 %v971
    %v1169 = vunpack.c.h.b16 %v971
    %v1170 = vunpack.c.l.b16 %v972
    %v1171 = vunpack.c.h.b16 %v972
    %v1172 = vunpack.c.l.b16 %v973
    %v1173 = vunpack.c.h.b16 %v973
    %v1174 = vunpack.c.l.b16 %v974
    %v1175 = vunpack.c.h.b16 %v974
    %v1176 = vunpack.c.l.b16 %v975
    %v1177 = vunpack.c.h.b16 %v975
    %v1178 = vunpack.c.l.b16 %v976
    %v1179 = vunpack.c.h.b16 %v976
    %v1180 = vunpack.c.l.b16 %v977
    %v1181 = vunpack.c.h.b16 %v977
    %v1182 = vunpack.c.l.b16 %v978
    %v1183 = vunpack.c.h.b16 %v978
    %v1184 = vunpack.c.l.b16 %v979
    %v1185 = vunpack.c.h.b16 %v979
    %v1186 = vunpack.c.l.b16 %v980
    %v1187 = vunpack.c.h.b16 %v980
    %v1188 = vunpack.c.l.b16 %v981
    %v1189 = vunpack.c.h.b16 %v981
    %v1190 = vunpack.c.l.b16 %v982
    %v1191 = vunpack.c.h.b16 %v982
    %v1192 = vunpack.c.l.b16 %v983
    %v1193 = vunpack.c.h.b16 %v983
    %v1194 = vunpack.c.l.b16 %v984
    %v1195 = vunpack.c.h.b16 %v984
    %v1196 = vunpack.c.l.b16 %v985
    %v1197 = vunpack.c.h.b16 %v985
    %v1198 = vunpack.c.l.b16 %v986
    %v1199 = vunpack.c.h.b16 %v986
    %v1200 = vunpack.c.l.b16 %v987
    %v1201 = vunpack.c.h.b16 %v987
    %v1202 = vunpack.c.l.b16 %v988
    %v1203 = vunpack.c.h.b16 %v988
    %v1204 = vunpack.c.l.b16 %v989
    %v1205 = vunpack.c.h.b16 %v989
    %v1206 = vunpack.c.l.b16 %v990
    %v1207 = vunpack.c.h.b16 %v990
    %v1208 = vunpack.c.l.b16 %v991
    %v1209 = vunpack.c.h.b16 %v991
    %v1210 = vunpack.c.l.b16 %v992
    %v1211 = vunpack.c.h.b16 %v992
    %v1212 = vunpack.c.l.b16 %v993
    %v1213 = vunpack.c.h.b16 %v993
    %v1214 = vunpack.c.l.b16 %v994
    %v1215 = vunpack.c.h.b16 %v994
    %v1216 = vpack.c.b16 %v1092, %v1088
    %v1217 = vpack.c.b16 %v1093, %v1089
    %v1218 = vpack.c.b16 %v1094, %v1090
    %v1219 = vpack.c.b16 %v1095, %v1091
    %v1220 = vpack.c.b16 %v1100, %v1096
    %v1221 = vpack.c.b16 %v1101, %v1097
    %v1222 = vpack.c.b16 %v1102, %v1098
    %v1223 = vpack.c.b16 %v1103, %v1099
    %v1224 = vpack.c.b16 %v1108, %v1104
    %v1225 = vpack.c.b16 %v1109, %v1105
    %v1226 = vpack.c.b16 %v1110, %v1106
    %v1227 = vpack.c.b16 %v1111, %v1107
    %v1228 = vpack.c.b16 %v1116, %v1112
    %v1229 = vpack.c.b16 %v1117, %v1113
    %v1230 = vpack.c.b16 %v1118, %v1114
    %v1231 = vpack.c.b16 %v1119, %v1115
    %v1232 = vpack.c.b16 %v1124, %v1120
    %v1233 = vpack.c.b16 %v1125, %v1121
    %v1234 = vpack.c.b16 %v1126, %v1122
    %v1235 = vpack.c.b16 %v1127, %v1123
    %v1236 = vpack.c.b16 %v1132, %v1128
    %v1237 = vpack.c.b16 %v1133, %v1129
    %v1238 = vpack.c.b16 %v1134, %v1130
    %v1239 = vpack.c.b16 %v1135, %v1131
    %v1240 = vpack.c.b16 %v1140, %v1136
    %v1241 = vpack.c.b16 %v1141, %v1137
    %v1242 = vpack.c.b16 %v1142, %v1138
    %v1243 = vpack.c.b16 %v1143, %v1139
    %v1244 = vpack.c.b16 %v1148, %v1144
    %v1245 = vpack.c.b16 %v1149, %v1145
    %v1246 = vpack.c.b16 %v1150, %v1146
    %v1247 = vpack.c.b16 %v1151, %v1147
    %v1248 = vpack.c.b16 %v1156, %v1152
    %v1249 = vpack.c.b16 %v1157, %v1153
    %v1250 = vpack.c.b16 %v1158, %v1154
    %v1251 = vpack.c.b16 %v1159, %v1155
    %v1252 = vpack.c.b16 %v1164, %v1160
    %v1253 = vpack.c.b16 %v1165, %v1161
    %v1254 = vpack.c.b16 %v1166, %v1162
    %v1255 = vpack.c.b16 %v1167, %v1163
    %v1256 = vpack.c.b16 %v1172, %v1168
    %v1257 = vpack.c.b16 %v1173, %v1169
    %v1258 = vpack.c.b16 %v1174, %v1170
    %v1259 = vpack.c.b16 %v1175, %v1171
    %v1260 = vpack.c.b16 %v1180, %v1176
    %v1261 = vpack.c.b16 %v1181, %v1177
    %v1262 = vpack.c.b16 %v1182, %v1178
    %v1263 = vpack.c.b16 %v1183, %v1179
    %v1264 = vpack.c.b16 %v1188, %v1184
    %v1265 = vpack.c.b16 %v1189, %v1185
    %v1266 = vpack.c.b16 %v1190, %v1186
    %v1267 = vpack.c.b16 %v1191, %v1187
    %v1268 = vpack.c.b16 %v1196, %v1192
    %v1269 = vpack.c.b16 %v1197, %v1193
    %v1270 = vpack.c.b16 %v1198, %v1194
    %v1271 = vpack.c.b16 %v1199, %v1195
    %v1272 = vpack.c.b16 %v1204, %v1200
    %v1273 = vpack.c.b16 %v1205, %v1201
    %v1274 = vpack.c.b16 %v1206, %v1202
    %v1275 = vpack.c.b16 %v1207, %v1203
    %v1276 = vpack.c.b16 %v1212, %v1208
    %v1277 = vpack.c.b16 %v1213, %v1209
    %v1278 = vpack.c.b16 %v1214, %v1210
    %v1279 = vpack.c.b16 %v1215, %v1211
    %1344 = vmatprep.subr.bf16.mxu0 %v1217
    %1345 = vmatpush1.bf16.msra.mxu0 %v1216
    %1346 = vmatprep.subr.bf16.mxu0 %v1221
    %1347 = vmatpush1.bf16.msra.mxu0 %v1220
    %1348 = vmatprep.subr.bf16.mxu0 %v1225
    %1349 = vmatpush1.bf16.msra.mxu0 %v1224
    %1350 = vmatprep.subr.bf16.mxu0 %v1229
    %1351 = vmatpush1.bf16.msra.mxu0 %v1228
    %1352 = vmatprep.subr.bf16.mxu0 %v1233
    %1353 = vmatpush1.bf16.msra.mxu0 %v1232
    %1354 = vmatprep.subr.bf16.mxu0 %v1237
    %1355 = vmatpush1.bf16.msra.mxu0 %v1236
    %1356 = vmatprep.subr.bf16.mxu0 %v1241
    %1357 = vmatpush1.bf16.msra.mxu0 %v1240
    %1358 = vmatprep.subr.bf16.mxu0 %v1245
    %1359 = vmatpush1.bf16.msra.mxu0 %v1244
    %1360 = vmatprep.subr.bf16.mxu0 %v1249
    %1361 = vmatpush1.bf16.msra.mxu0 %v1248
    %1362 = vmatprep.subr.bf16.mxu0 %v1253
    %1363 = vmatpush1.bf16.msra.mxu0 %v1252
    %1364 = vmatprep.subr.bf16.mxu0 %v1257
    %1365 = vmatpush1.bf16.msra.mxu0 %v1256
    %1366 = vmatprep.subr.bf16.mxu0 %v1261
    %1367 = vmatpush1.bf16.msra.mxu0 %v1260
    %1368 = vmatprep.subr.bf16.mxu0 %v1265
    %1369 = vmatpush1.bf16.msra.mxu0 %v1264
    %1370 = vmatprep.subr.bf16.mxu0 %v1269
    %1371 = vmatpush1.bf16.msra.mxu0 %v1268
    %1372 = vmatprep.subr.bf16.mxu0 %v1273
    %1373 = vmatpush1.bf16.msra.mxu0 %v1272
    %1374 = vmatprep.subr.bf16.mxu0 %v1277
    %1375 = vmatpush1.bf16.msra.mxu0 %v1276
    %1376 = vmatprep.mubr.bf16.mxu0 %v1023
    %1377 = vmatmul.mubr.bf16.gmra.mrb[0].mxu0 %v1020
    %v1378 = vpop.f32.mrb[0].mxu0
    %v1379 = vadd.f32 0.0, %v1378
    %v1380 = vpop.f32.mrb[0].mxu0
    %v1381 = vadd.f32 0.0, %v1380
    %v1382 = vpop.f32.mrb[0].mxu0
    %v1383 = vpop.f32.mrb[0].mxu0
    %1384 = vdwg.mxu0
    %1385 = vmatprep.subr.bf16.mxu0 %v1219
    %1386 = vmatpush1.bf16.msra.mxu0 %v1218
    %1387 = vmatprep.subr.bf16.mxu0 %v1223
    %1388 = vmatpush1.bf16.msra.mxu0 %v1222
    %1389 = vmatprep.subr.bf16.mxu0 %v1227
    %1390 = vmatpush1.bf16.msra.mxu0 %v1226
    %1391 = vmatprep.subr.bf16.mxu0 %v1231
    %1392 = vmatpush1.bf16.msra.mxu0 %v1230
    %1393 = vmatprep.subr.bf16.mxu0 %v1235
    %1394 = vmatpush1.bf16.msra.mxu0 %v1234
    %1395 = vmatprep.subr.bf16.mxu0 %v1239
    %1396 = vmatpush1.bf16.msra.mxu0 %v1238
    %1397 = vmatprep.subr.bf16.mxu0 %v1243
    %1398 = vmatpush1.bf16.msra.mxu0 %v1242
    %1399 = vmatprep.subr.bf16.mxu0 %v1247
    %1400 = vmatpush1.bf16.msra.mxu0 %v1246
    %1401 = vmatprep.subr.bf16.mxu0 %v1251
    %1402 = vmatpush1.bf16.msra.mxu0 %v1250
    %1403 = vmatprep.subr.bf16.mxu0 %v1255
    %1404 = vmatpush1.bf16.msra.mxu0 %v1254
    %1405 = vmatprep.subr.bf16.mxu0 %v1259
    %1406 = vmatpush1.bf16.msra.mxu0 %v1258
    %1407 = vmatprep.subr.bf16.mxu0 %v1263
    %1408 = vmatpush1.bf16.msra.mxu0 %v1262
    %1409 = vmatprep.subr.bf16.mxu0 %v1267
    %1410 = vmatpush1.bf16.msra.mxu0 %v1266
    %1411 = vmatprep.subr.bf16.mxu0 %v1271
    %1412 = vmatpush1.bf16.msra.mxu0 %v1270
    %1413 = vmatprep.subr.bf16.mxu0 %v1275
    %1414 = vmatpush1.bf16.msra.mxu0 %v1274
    %1415 = vmatprep.subr.bf16.mxu0 %v1279
    %1416 = vmatpush1.bf16.msra.mxu0 %v1278
    %1417 = vmatprep.mubr.bf16.mxu0 %v1023
    %1418 = vmatmul.mubr.bf16.gmra.mrb[0].mxu0 %v1020
    %v1419 = vpop.f32.mrb[0].mxu0
    %v1420 = vadd.f32 0.0, %v1419
    %v1421 = vpop.f32.mrb[0].mxu0
    %v1422 = vadd.f32 0.0, %v1421
    %v1423 = vpop.f32.mrb[0].mxu0
    %v1424 = vpop.f32.mrb[0].mxu0
    %1425 = vdwg.mxu0
    %v1426 = vxor.u32 %v1379, 2147483648
    %v1427 = vxor.u32 %v1381, 2147483648
    %v1428 = vmul.f32 %v1426, 1.442695
    %v1429 = vpow.pop %v1428
    %v1430 = vmul.f32 %v1427, 1.442695
    %v1431 = vpow.pop %v1430
    %v1432 = vadd.f32 %v1429, 1.0
    %v1433 = vadd.f32 %v1431, 1.0
    %v1434 = vrcp.pop %v1432
    %v1435 = vmul.f32 1.0, %v1434
    %v1436 = vrcp.pop %v1433
    %v1437 = vmul.f32 1.0, %v1436
    %v1438 = vmul.f32 %v1435, %v1422
    %v1439 = vadd.f32 %v1420, %v1438
    %v1440 = vtanh.pop %v1439
    %v1441 = vsub.f32 1.0, %v1437
    %v1442 = vmul.f32 %v1441, %v1440
    %v1443 = vmul.f32 %v1437, %v926
    %v1444 = vadd.f32 %v1442, %v1443
    %v1445 = vpack.c.bf16 %v1444, %v1444
    %v1462 = vunpack.c.l.b16 %v995
    %v1463 = vunpack.c.l.b16 %v996
    %v1464 = vunpack.c.l.b16 %v997
    %v1465 = vunpack.c.l.b16 %v998
    %v1466 = vunpack.c.l.b16 %v999
    %v1467 = vunpack.c.l.b16 %v1000
    %v1468 = vunpack.c.l.b16 %v1001
    %v1469 = vunpack.c.l.b16 %v1002
    %v1470 = vunpack.c.l.b16 %v1003
    %v1471 = vunpack.c.l.b16 %v1004
    %v1472 = vunpack.c.l.b16 %v1005
    %v1473 = vunpack.c.l.b16 %v1006
    %v1474 = vunpack.c.l.b16 %v1007
    %v1475 = vunpack.c.l.b16 %v1008
    %v1476 = vunpack.c.l.b16 %v1009
    %v1477 = vunpack.c.l.b16 %v1010
    %v1478 = vpack.c.b16 %v1463, %v1462
    %v1479 = vpack.c.b16 %v1465, %v1464
    %v1480 = vpack.c.b16 %v1467, %v1466
    %v1481 = vpack.c.b16 %v1469, %v1468
    %v1482 = vpack.c.b16 %v1471, %v1470
    %v1483 = vpack.c.b16 %v1473, %v1472
    %v1484 = vpack.c.b16 %v1475, %v1474
    %v1485 = vpack.c.b16 %v1477, %v1476
    %1494 = vmatprep.subr.bf16.mxu0 0
    %1495 = vmatpush1.bf16.msra.mxu0 %v1478
    %1496 = vmatprep.subr.bf16.mxu0 0
    %1497 = vmatpush1.bf16.msra.mxu0 %v1479
    %1498 = vmatprep.subr.bf16.mxu0 0
    %1499 = vmatpush1.bf16.msra.mxu0 %v1480
    %1500 = vmatprep.subr.bf16.mxu0 0
    %1501 = vmatpush1.bf16.msra.mxu0 %v1481
    %1502 = vmatprep.subr.bf16.mxu0 0
    %1503 = vmatpush1.bf16.msra.mxu0 %v1482
    %1504 = vmatprep.subr.bf16.mxu0 0
    %1505 = vmatpush1.bf16.msra.mxu0 %v1483
    %1506 = vmatprep.subr.bf16.mxu0 0
    %1507 = vmatpush1.bf16.msra.mxu0 %v1484
    %1508 = vmatprep.subr.bf16.mxu0 0
    %1509 = vmatpush1.bf16.msra.mxu0 %v1485
    %1510 = vmatprep.subr.bf16.mxu0 0
    %1511 = vmatpush1.bf16.msra.mxu0 0
    %1512 = vmatprep.subr.bf16.mxu0 0
    %1513 = vmatpush1.bf16.msra.mxu0 0
    %1514 = vmatprep.subr.bf16.mxu0 0
    %1515 = vmatpush1.bf16.msra.mxu0 0
    %1516 = vmatprep.subr.bf16.mxu0 0
    %1517 = vmatpush1.bf16.msra.mxu0 0
    %1518 = vmatprep.subr.bf16.mxu0 0
    %1519 = vmatpush1.bf16.msra.mxu0 0
    %1520 = vmatprep.subr.bf16.mxu0 0
    %1521 = vmatpush1.bf16.msra.mxu0 0
    %1522 = vmatprep.subr.bf16.mxu0 0
    %1523 = vmatpush1.bf16.msra.mxu0 0
    %1524 = vmatprep.subr.bf16.mxu0 0
    %1525 = vmatpush1.bf16.msra.mxu0 0
    %1526 = vmatprep.mubr.bf16.mxu0 0
    %1527 = vmatmul.mubr.bf16.gmra.mrb[0].mxu0 %v1445
    %v1528 = vpop.f32.mrb[0].mxu0
    %v1529 = vadd.f32 %v1016, %v1528
    %v1530 = vpop.f32.mrb[0].mxu0
    %v1531 = vpop.f32.mrb[0].mxu0
    %v1532 = vpop.f32.mrb[0].mxu0
    %1533 = vdwg.mxu0
    %1534 = vst [vmem:[#allocation2] sm:$0x3] %v1529
    %vm1535 = vcmask 1041408
    %v1536 = vsel %vm1535, %v1529, -inf
    %1537 = vmax.xlane.f32.xlu0 %v1536
    %v1538 = vpop.xlane.xlu0 %1537
    %vm1539 = vcmp.eq.f32.partialorder %v1529, %v1538
    %v1540 = vsel %vm1539, 1, 0
    %v1541 = vcvt.s32.f32 %v1540
    %v1542 = vpack.c.bf16 %v1541, %v1541
    %1543 = vmax.index.xlane.f32.xlu0 %v1536
    %v1544 = vpop.xlane.xlu0 %1543
    %vm1545 = vcmp.eq.s32.totalorder %v1019, 1
    %v1546 = vsel %vm1545, %v1544, %v1022
    %1547 = vmatprep.subr.bf16.mxu0 %v1217
    %1548 = vmatpush1.bf16.msra.mxu0 %v1216
    %1549 = vmatprep.subr.bf16.mxu0 %v1221
    %1550 = vmatpush1.bf16.msra.mxu0 %v1220
    %1551 = vmatprep.subr.bf16.mxu0 %v1225
    %1552 = vmatpush1.bf16.msra.mxu0 %v1224
    %1553 = vmatprep.subr.bf16.mxu0 %v1229
    %1554 = vmatpush1.bf16.msra.mxu0 %v1228
    %1555 = vmatprep.subr.bf16.mxu0 %v1233
    %1556 = vmatpush1.bf16.msra.mxu0 %v1232
    %1557 = vmatprep.subr.bf16.mxu0 %v1237
    %1558 = vmatpush1.bf16.msra.mxu0 %v1236
    %1559 = vmatprep.subr.bf16.mxu0 %v1241
    %1560 = vmatpush1.bf16.msra.mxu0 %v1240
    %1561 = vmatprep.subr.bf16.mxu0 %v1245
    %1562 = vmatpush1.bf16.msra.mxu0 %v1244
    %1563 = vmatprep.subr.bf16.mxu0 %v1249
    %1564 = vmatpush1.bf16.msra.mxu0 %v1248
    %1565 = vmatprep.subr.bf16.mxu0 %v1253
    %1566 = vmatpush1.bf16.msra.mxu0 %v1252
    %1567 = vmatprep.subr.bf16.mxu0 %v1257
    %1568 = vmatpush1.bf16.msra.mxu0 %v1256
    %1569 = vmatprep.subr.bf16.mxu0 %v1261
    %1570 = vmatpush1.bf16.msra.mxu0 %v1260
    %1571 = vmatprep.subr.bf16.mxu0 %v1265
    %1572 = vmatpush1.bf16.msra.mxu0 %v1264
    %1573 = vmatprep.subr.bf16.mxu0 %v1269
    %1574 = vmatpush1.bf16.msra.mxu0 %v1268
    %1575 = vmatprep.subr.bf16.mxu0 %v1273
    %1576 = vmatpush1.bf16.msra.mxu0 %v1272
    %1577 = vmatprep.subr.bf16.mxu0 %v1277
    %1578 = vmatpush1.bf16.msra.mxu0 %v1276
    %1579 = vmatprep.mubr.bf16.mxu0 %v1445
    %1580 = vmatmul.mubr.bf16.gmra.mrb[0].mxu0 %v1542
    %v1581 = vpop.f32.mrb[0].mxu0
    %v1582 = vadd.f32 0.0, %v1581
    %v1583 = vpop.f32.mrb[0].mxu0
    %v1584 = vadd.f32 0.0, %v1583
    %v1585 = vpop.f32.mrb[0].mxu0
    %v1586 = vpop.f32.mrb[0].mxu0
    %1587 = vdwg.mxu0
    %1588 = vmatprep.subr.bf16.mxu0 %v1219
    %1589 = vmatpush1.bf16.msra.mxu0 %v1218
    %1590 = vmatprep.subr.bf16.mxu0 %v1223
    %1591 = vmatpush1.bf16.msra.mxu0 %v1222
    %1592 = vmatprep.subr.bf16.mxu0 %v1227
    %1593 = vmatpush1.bf16.msra.mxu0 %v1226
    %1594 = vmatprep.subr.bf16.mxu0 %v1231
    %1595 = vmatpush1.bf16.msra.mxu0 %v1230
    %1596 = vmatprep.subr.bf16.mxu0 %v1235
    %1597 = vmatpush1.bf16.msra.mxu0 %v1234
    %1598 = vmatprep.subr.bf16.mxu0 %v1239
    %1599 = vmatpush1.bf16.msra.mxu0 %v1238
    %1600 = vmatprep.subr.bf16.mxu0 %v1243
    %1601 = vmatpush1.bf16.msra.mxu0 %v1242
    %1602 = vmatprep.subr.bf16.mxu0 %v1247
    %1603 = vmatpush1.bf16.msra.mxu0 %v1246
    %1604 = vmatprep.subr.bf16.mxu0 %v1251
    %1605 = vmatpush1.bf16.msra.mxu0 %v1250
    %1606 = vmatprep.subr.bf16.mxu0 %v1255
    %1607 = vmatpush1.bf16.msra.mxu0 %v1254
    %1608 = vmatprep.subr.bf16.mxu0 %v1259
    %1609 = vmatpush1.bf16.msra.mxu0 %v1258
    %1610 = vmatprep.subr.bf16.mxu0 %v1263
    %1611 = vmatpush1.bf16.msra.mxu0 %v1262
    %1612 = vmatprep.subr.bf16.mxu0 %v1267
    %1613 = vmatpush1.bf16.msra.mxu0 %v1266
    %1614 = vmatprep.subr.bf16.mxu0 %v1271
    %1615 = vmatpush1.bf16.msra.mxu0 %v1270
    %1616 = vmatprep.subr.bf16.mxu0 %v1275
    %1617 = vmatpush1.bf16.msra.mxu0 %v1274
    %1618 = vmatprep.subr.bf16.mxu0 %v1279
    %1619 = vmatpush1.bf16.msra.mxu0 %v1278
    %1620 = vmatprep.mubr.bf16.mxu0 %v1445
    %1621 = vmatmul.mubr.bf16.gmra.mrb[0].mxu0 %v1542
    %v1622 = vpop.f32.mrb[0].mxu0
    %v1623 = vadd.f32 0.0, %v1622
    %v1624 = vpop.f32.mrb[0].mxu0
    %v1625 = vadd.f32 0.0, %v1624
    %v1626 = vpop.f32.mrb[0].mxu0
    %v1627 = vpop.f32.mrb[0].mxu0
    %1628 = vdwg.mxu0
    %v1629 = vxor.u32 %v1582, 2147483648
    %v1630 = vxor.u32 %v1584, 2147483648
    %v1631 = vmul.f32 %v1629, 1.442695
    %v1632 = vpow.pop %v1631
    %v1633 = vmul.f32 %v1630, 1.442695
    %v1634 = vpow.pop %v1633
    %v1635 = vadd.f32 %v1632, 1.0
    %v1636 = vadd.f32 %v1634, 1.0
    %v1637 = vrcp.pop %v1635
    %v1638 = vmul.f32 1.0, %v1637
    %v1639 = vrcp.pop %v1636
    %v1640 = vmul.f32 1.0, %v1639
    %v1641 = vmul.f32 %v1638, %v1625
    %v1642 = vadd.f32 %v1623, %v1641
    %v1643 = vtanh.pop %v1642
    %v1644 = vsub.f32 1.0, %v1640
    %v1645 = vmul.f32 %v1644, %v1643
    %v1646 = vmul.f32 %v1640, %v1444
    %v1647 = vadd.f32 %v1645, %v1646
    %v1648 = vpack.c.bf16 %v1647, %v1647
    %1649 = vmatprep.subr.bf16.mxu0 0
    %1650 = vmatpush1.bf16.msra.mxu0 %v1478
    %1651 = vmatprep.subr.bf16.mxu0 0
    %1652 = vmatpush1.bf16.msra.mxu0 %v1479
    %1653 = vmatprep.subr.bf16.mxu0 0
    %1654 = vmatpush1.bf16.msra.mxu0 %v1480
    %1655 = vmatprep.subr.bf16.mxu0 0
    %1656 = vmatpush1.bf16.msra.mxu0 %v1481
    %1657 = vmatprep.subr.bf16.mxu0 0
    %1658 = vmatpush1.bf16.msra.mxu0 %v1482
    %1659 = vmatprep.subr.bf16.mxu0 0
    %1660 = vmatpush1.bf16.msra.mxu0 %v1483
    %1661 = vmatprep.subr.bf16.mxu0 0
    %1662 = vmatpush1.bf16.msra.mxu0 %v1484
    %1663 = vmatprep.subr.bf16.mxu0 0
    %1664 = vmatpush1.bf16.msra.mxu0 %v1485
    %1665 = vmatprep.subr.bf16.mxu0 0
    %1666 = vmatpush1.bf16.msra.mxu0 0
    %1667 = vmatprep.subr.bf16.mxu0 0
    %1668 = vmatpush1.bf16.msra.mxu0 0
    %1669 = vmatprep.subr.bf16.mxu0 0
    %1670 = vmatpush1.bf16.msra.mxu0 0
    %1671 = vmatprep.subr.bf16.mxu0 0
    %1672 = vmatpush1.bf16.msra.mxu0 0
    %1673 = vmatprep.subr.bf16.mxu0 0
    %1674 = vmatpush1.bf16.msra.mxu0 0
    %1675 = vmatprep.subr.bf16.mxu0 0
    %1676 = vmatpush1.bf16.msra.mxu0 0
    %1677 = vmatprep.subr.bf16.mxu0 0
    %1678 = vmatpush1.bf16.msra.mxu0 0
    %1679 = vmatprep.subr.bf16.mxu0 0
    %1680 = vmatpush1.bf16.msra.mxu0 0
    %1681 = vmatprep.mubr.bf16.mxu0 0
    %1682 = vmatmul.mubr.bf16.gmra.mrb[0].mxu0 %v1648
    %v1683 = vpop.f32.mrb[0].mxu0
    %v1684 = vadd.f32 %v1016, %v1683
    %v1685 = vpop.f32.mrb[0].mxu0
    %v1686 = vpop.f32.mrb[0].mxu0
    %v1687 = vpop.f32.mrb[0].mxu0
    %1688 = vdwg.mxu0
    %s1689 = scalar_lea.vmem [#allocation2], 2
    %1690 = vst [vmem:[%s1689] sm:$0x3] %v1684
    %v1691 = vsel %vm1535, %v1684, -inf
    %1692 = vmax.xlane.f32.xlu0 %v1691
    %v1693 = vpop.xlane.xlu0 %1692
    %vm1694 = vcmp.eq.f32.partialorder %v1684, %v1693
    %v1695 = vsel %vm1694, 1, 0
    %v1696 = vcvt.s32.f32 %v1695
    %v1697 = vpack.c.bf16 %v1696, %v1696
    %1698 = vmax.index.xlane.f32.xlu0 %v1691
    %v1699 = vpop.xlane.xlu0 %1698
    %vm1700 = vcmp.eq.s32.totalorder %v1019, 2
    %v1701 = vsel %vm1700, %v1699, %v1546
    %1702 = vmatprep.subr.bf16.mxu0 %v1217
    %1703 = vmatpush1.bf16.msra.mxu0 %v1216
    %1704 = vmatprep.subr.bf16.mxu0 %v1221
    %1705 = vmatpush1.bf16.msra.mxu0 %v1220
    %1706 = vmatprep.subr.bf16.mxu0 %v1225
    %1707 = vmatpush1.bf16.msra.mxu0 %v1224
    %1708 = vmatprep.subr.bf16.mxu0 %v1229
    %1709 = vmatpush1.bf16.msra.mxu0 %v1228
    %1710 = vmatprep.subr.bf16.mxu0 %v1233
    %1711 = vmatpush1.bf16.msra.mxu0 %v1232
    %1712 = vmatprep.subr.bf16.mxu0 %v1237
    %1713 = vmatpush1.bf16.msra.mxu0 %v1236
    %1714 = vmatprep.subr.bf16.mxu0 %v1241
    %1715 = vmatpush1.bf16.msra.mxu0 %v1240
    %1716 = vmatprep.subr.bf16.mxu0 %v1245
    %1717 = vmatpush1.bf16.msra.mxu0 %v1244
    %1718 = vmatprep.subr.bf16.mxu0 %v1249
    %1719 = vmatpush1.bf16.msra.mxu0 %v1248
    %1720 = vmatprep.subr.bf16.mxu0 %v1253
    %1721 = vmatpush1.bf16.msra.mxu0 %v1252
    %1722 = vmatprep.subr.bf16.mxu0 %v1257
    %1723 = vmatpush1.bf16.msra.mxu0 %v1256
    %1724 = vmatprep.subr.bf16.mxu0 %v1261
    %1725 = vmatpush1.bf16.msra.mxu0 %v1260
    %1726 = vmatprep.subr.bf16.mxu0 %v1265
    %1727 = vmatpush1.bf16.msra.mxu0 %v1264
    %1728 = vmatprep.subr.bf16.mxu0 %v1269
    %1729 = vmatpush1.bf16.msra.mxu0 %v1268
    %1730 = vmatprep.subr.bf16.mxu0 %v1273
    %1731 = vmatpush1.bf16.msra.mxu0 %v1272
    %1732 = vmatprep.subr.bf16.mxu0 %v1277
    %1733 = vmatpush1.bf16.msra.mxu0 %v1276
    %1734 = vmatprep.mubr.bf16.mxu0 %v1648
    %1735 = vmatmul.mubr.bf16.gmra.mrb[0].mxu0 %v1697
    %v1736 = vpop.f32.mrb[0].mxu0
    %v1737 = vadd.f32 0.0, %v1736
    %v1738 = vpop.f32.mrb[0].mxu0
    %v1739 = vadd.f32 0.0, %v1738
    %v1740 = vpop.f32.mrb[0].mxu0
    %v1741 = vpop.f32.mrb[0].mxu0
    %1742 = vdwg.mxu0
    %1743 = vmatprep.subr.bf16.mxu0 %v1219
    %1744 = vmatpush1.bf16.msra.mxu0 %v1218
    %1745 = vmatprep.subr.bf16.mxu0 %v1223
    %1746 = vmatpush1.bf16.msra.mxu0 %v1222
    %1747 = vmatprep.subr.bf16.mxu0 %v1227
    %1748 = vmatpush1.bf16.msra.mxu0 %v1226
    %1749 = vmatprep.subr.bf16.mxu0 %v1231
    %1750 = vmatpush1.bf16.msra.mxu0 %v1230
    %1751 = vmatprep.subr.bf16.mxu0 %v1235
    %1752 = vmatpush1.bf16.msra.mxu0 %v1234
    %1753 = vmatprep.subr.bf16.mxu0 %v1239
    %1754 = vmatpush1.bf16.msra.mxu0 %v1238
    %1755 = vmatprep.subr.bf16.mxu0 %v1243
    %1756 = vmatpush1.bf16.msra.mxu0 %v1242
    %1757 = vmatprep.subr.bf16.mxu0 %v1247
    %1758 = vmatpush1.bf16.msra.mxu0 %v1246
    %1759 = vmatprep.subr.bf16.mxu0 %v1251
    %1760 = vmatpush1.bf16.msra.mxu0 %v1250
    %1761 = vmatprep.subr.bf16.mxu0 %v1255
    %1762 = vmatpush1.bf16.msra.mxu0 %v1254
    %1763 = vmatprep.subr.bf16.mxu0 %v1259
    %1764 = vmatpush1.bf16.msra.mxu0 %v1258
    %1765 = vmatprep.subr.bf16.mxu0 %v1263
    %1766 = vmatpush1.bf16.msra.mxu0 %v1262
    %1767 = vmatprep.subr.bf16.mxu0 %v1267
    %1768 = vmatpush1.bf16.msra.mxu0 %v1266
    %1769 = vmatprep.subr.bf16.mxu0 %v1271
    %1770 = vmatpush1.bf16.msra.mxu0 %v1270
    %1771 = vmatprep.subr.bf16.mxu0 %v1275
    %1772 = vmatpush1.bf16.msra.mxu0 %v1274
    %1773 = vmatprep.subr.bf16.mxu0 %v1279
    %1774 = vmatpush1.bf16.msra.mxu0 %v1278
    %1775 = vmatprep.mubr.bf16.mxu0 %v1648
    %1776 = vmatmul.mubr.bf16.gmra.mrb[0].mxu0 %v1697
    %v1777 = vpop.f32.mrb[0].mxu0
    %v1778 = vadd.f32 0.0, %v1777
    %v1779 = vpop.f32.mrb[0].mxu0
    %v1780 = vadd.f32 0.0, %v1779
    %v1781 = vpop.f32.mrb[0].mxu0
    %v1782 = vpop.f32.mrb[0].mxu0
    %1783 = vdwg.mxu0
    %v1784 = vxor.u32 %v1737, 2147483648
    %v1785 = vxor.u32 %v1739, 2147483648
    %v1786 = vmul.f32 %v1784, 1.442695
    %v1787 = vpow.pop %v1786
    %v1788 = vmul.f32 %v1785, 1.442695
    %v1789 = vpow.pop %v1788
    %v1790 = vadd.f32 %v1787, 1.0
    %v1791 = vadd.f32 %v1789, 1.0
    %v1792 = vrcp.pop %v1790
    %v1793 = vmul.f32 1.0, %v1792
    %v1794 = vrcp.pop %v1791
    %v1795 = vmul.f32 1.0, %v1794
    %v1796 = vmul.f32 %v1793, %v1780
    %v1797 = vadd.f32 %v1778, %v1796
    %v1798 = vtanh.pop %v1797
    %v1799 = vsub.f32 1.0, %v1795
    %v1800 = vmul.f32 %v1799, %v1798
    %v1801 = vmul.f32 %v1795, %v1647
    %v1802 = vadd.f32 %v1800, %v1801
    %v1803 = vpack.c.bf16 %v1802, %v1802
    %1804 = vmatprep.subr.bf16.mxu0 0
    %1805 = vmatpush1.bf16.msra.mxu0 %v1478
    %1806 = vmatprep.subr.bf16.mxu0 0
    %1807 = vmatpush1.bf16.msra.mxu0 %v1479
    %1808 = vmatprep.subr.bf16.mxu0 0
    %1809 = vmatpush1.bf16.msra.mxu0 %v1480
    %1810 = vmatprep.subr.bf16.mxu0 0
    %1811 = vmatpush1.bf16.msra.mxu0 %v1481
    %1812 = vmatprep.subr.bf16.mxu0 0
    %1813 = vmatpush1.bf16.msra.mxu0 %v1482
    %1814 = vmatprep.subr.bf16.mxu0 0
    %1815 = vmatpush1.bf16.msra.mxu0 %v1483
    %1816 = vmatprep.subr.bf16.mxu0 0
    %1817 = vmatpush1.bf16.msra.mxu0 %v1484
    %1818 = vmatprep.subr.bf16.mxu0 0
    %1819 = vmatpush1.bf16.msra.mxu0 %v1485
    %1820 = vmatprep.subr.bf16.mxu0 0
    %1821 = vmatpush1.bf16.msra.mxu0 0
    %1822 = vmatprep.subr.bf16.mxu0 0
    %1823 = vmatpush1.bf16.msra.mxu0 0
    %1824 = vmatprep.subr.bf16.mxu0 0
    %1825 = vmatpush1.bf16.msra.mxu0 0
    %1826 = vmatprep.subr.bf16.mxu0 0
    %1827 = vmatpush1.bf16.msra.mxu0 0
    %1828 = vmatprep.subr.bf16.mxu0 0
    %1829 = vmatpush1.bf16.msra.mxu0 0
    %1830 = vmatprep.subr.bf16.mxu0 0
    %1831 = vmatpush1.bf16.msra.mxu0 0
    %1832 = vmatprep.subr.bf16.mxu0 0
    %1833 = vmatpush1.bf16.msra.mxu0 0
    %1834 = vmatprep.subr.bf16.mxu0 0
    %1835 = vmatpush1.bf16.msra.mxu0 0
    %1836 = vmatprep.mubr.bf16.mxu0 0
    %1837 = vmatmul.mubr.bf16.gmra.mrb[0].mxu0 %v1803
    %v1838 = vpop.f32.mrb[0].mxu0
    %v1839 = vadd.f32 %v1016, %v1838
    %v1840 = vpop.f32.mrb[0].mxu0
    %v1841 = vpop.f32.mrb[0].mxu0
    %v1842 = vpop.f32.mrb[0].mxu0
    %1843 = vdwg.mxu0
    %s1844 = scalar_lea.vmem [#allocation2], 4
    %1845 = vst [vmem:[%s1844] sm:$0x3] %v1839
    %v1846 = vsel %vm1535, %v1839, -inf
    %1847 = vmax.xlane.f32.xlu0 %v1846
    %v1848 = vpop.xlane.xlu0 %1847
    %vm1849 = vcmp.eq.f32.partialorder %v1839, %v1848
    %v1850 = vsel %vm1849, 1, 0
    %v1851 = vcvt.s32.f32 %v1850
    %v1852 = vpack.c.bf16 %v1851, %v1851
    %1853 = vmax.index.xlane.f32.xlu0 %v1846
    %v1854 = vpop.xlane.xlu0 %1853
    %vm1855 = vcmp.eq.s32.totalorder %v1019, 3
    %v1856 = vsel %vm1855, %v1854, %v1701
    %1857 = vmatprep.subr.bf16.mxu0 %v1217
    %1858 = vmatpush1.bf16.msra.mxu0 %v1216
    %1859 = vmatprep.subr.bf16.mxu0 %v1221
    %1860 = vmatpush1.bf16.msra.mxu0 %v1220
    %1861 = vmatprep.subr.bf16.mxu0 %v1225
    %1862 = vmatpush1.bf16.msra.mxu0 %v1224
    %1863 = vmatprep.subr.bf16.mxu0 %v1229
    %1864 = vmatpush1.bf16.msra.mxu0 %v1228
    %1865 = vmatprep.subr.bf16.mxu0 %v1233
    %1866 = vmatpush1.bf16.msra.mxu0 %v1232
    %1867 = vmatprep.subr.bf16.mxu0 %v1237
    %1868 = vmatpush1.bf16.msra.mxu0 %v1236
    %1869 = vmatprep.subr.bf16.mxu0 %v1241
    %1870 = vmatpush1.bf16.msra.mxu0 %v1240
    %1871 = vmatprep.subr.bf16.mxu0 %v1245
    %1872 = vmatpush1.bf16.msra.mxu0 %v1244
    %1873 = vmatprep.subr.bf16.mxu0 %v1249
    %1874 = vmatpush1.bf16.msra.mxu0 %v1248
    %1875 = vmatprep.subr.bf16.mxu0 %v1253
    %1876 = vmatpush1.bf16.msra.mxu0 %v1252
    %1877 = vmatprep.subr.bf16.mxu0 %v1257
    %1878 = vmatpush1.bf16.msra.mxu0 %v1256
    %1879 = vmatprep.subr.bf16.mxu0 %v1261
    %1880 = vmatpush1.bf16.msra.mxu0 %v1260
    %1881 = vmatprep.subr.bf16.mxu0 %v1265
    %1882 = vmatpush1.bf16.msra.mxu0 %v1264
    %1883 = vmatprep.subr.bf16.mxu0 %v1269
    %1884 = vmatpush1.bf16.msra.mxu0 %v1268
    %1885 = vmatprep.subr.bf16.mxu0 %v1273
    %1886 = vmatpush1.bf16.msra.mxu0 %v1272
    %1887 = vmatprep.subr.bf16.mxu0 %v1277
    %1888 = vmatpush1.bf16.msra.mxu0 %v1276
    %1889 = vmatprep.mubr.bf16.mxu0 %v1803
    %1890 = vmatmul.mubr.bf16.gmra.mrb[0].mxu0 %v1852
    %v1891 = vpop.f32.mrb[0].mxu0
    %v1892 = vadd.f32 0.0, %v1891
    %v1893 = vpop.f32.mrb[0].mxu0
    %v1894 = vadd.f32 0.0, %v1893
    %v1895 = vpop.f32.mrb[0].mxu0
    %v1896 = vpop.f32.mrb[0].mxu0
    %1897 = vdwg.mxu0
    %1898 = vmatprep.subr.bf16.mxu0 %v1219
    %1899 = vmatpush1.bf16.msra.mxu0 %v1218
    %1900 = vmatprep.subr.bf16.mxu0 %v1223
    %1901 = vmatpush1.bf16.msra.mxu0 %v1222
    %1902 = vmatprep.subr.bf16.mxu0 %v1227
    %1903 = vmatpush1.bf16.msra.mxu0 %v1226
    %1904 = vmatprep.subr.bf16.mxu0 %v1231
    %1905 = vmatpush1.bf16.msra.mxu0 %v1230
    %1906 = vmatprep.subr.bf16.mxu0 %v1235
    %1907 = vmatpush1.bf16.msra.mxu0 %v1234
    %1908 = vmatprep.subr.bf16.mxu0 %v1239
    %1909 = vmatpush1.bf16.msra.mxu0 %v1238
    %1910 = vmatprep.subr.bf16.mxu0 %v1243
    %1911 = vmatpush1.bf16.msra.mxu0 %v1242
    %1912 = vmatprep.subr.bf16.mxu0 %v1247
    %1913 = vmatpush1.bf16.msra.mxu0 %v1246
    %1914 = vmatprep.subr.bf16.mxu0 %v1251
    %1915 = vmatpush1.bf16.msra.mxu0 %v1250
    %1916 = vmatprep.subr.bf16.mxu0 %v1255
    %1917 = vmatpush1.bf16.msra.mxu0 %v1254
    %1918 = vmatprep.subr.bf16.mxu0 %v1259
    %1919 = vmatpush1.bf16.msra.mxu0 %v1258
    %1920 = vmatprep.subr.bf16.mxu0 %v1263
    %1921 = vmatpush1.bf16.msra.mxu0 %v1262
    %1922 = vmatprep.subr.bf16.mxu0 %v1267
    %1923 = vmatpush1.bf16.msra.mxu0 %v1266
    %1924 = vmatprep.subr.bf16.mxu0 %v1271
    %1925 = vmatpush1.bf16.msra.mxu0 %v1270
    %1926 = vmatprep.subr.bf16.mxu0 %v1275
    %1927 = vmatpush1.bf16.msra.mxu0 %v1274
    %1928 = vmatprep.subr.bf16.mxu0 %v1279
    %1929 = vmatpush1.bf16.msra.mxu0 %v1278
    %1930 = vmatprep.mubr.bf16.mxu0 %v1803
    %1931 = vmatmul.mubr.bf16.gmra.mrb[0].mxu0 %v1852
    %v1932 = vpop.f32.mrb[0].mxu0
    %v1933 = vadd.f32 0.0, %v1932
    %v1934 = vpop.f32.mrb[0].mxu0
    %v1935 = vadd.f32 0.0, %v1934
    %v1936 = vpop.f32.mrb[0].mxu0
    %v1937 = vpop.f32.mrb[0].mxu0
    %1938 = vdwg.mxu0
    %v1939 = vxor.u32 %v1892, 2147483648
    %v1940 = vxor.u32 %v1894, 2147483648
    %v1941 = vmul.f32 %v1939, 1.442695
    %v1942 = vpow.pop %v1941
    %v1943 = vmul.f32 %v1940, 1.442695
    %v1944 = vpow.pop %v1943
    %v1945 = vadd.f32 %v1942, 1.0
    %v1946 = vadd.f32 %v1944, 1.0
    %v1947 = vrcp.pop %v1945
    %v1948 = vmul.f32 1.0, %v1947
    %v1949 = vrcp.pop %v1946
    %v1950 = vmul.f32 1.0, %v1949
    %v1951 = vmul.f32 %v1948, %v1935
    %v1952 = vadd.f32 %v1933, %v1951
    %v1953 = vtanh.pop %v1952
    %v1954 = vsub.f32 1.0, %v1950
    %v1955 = vmul.f32 %v1954, %v1953
    %v1956 = vmul.f32 %v1950, %v1802
    %v1957 = vadd.f32 %v1955, %v1956
    %v1958 = vpack.c.bf16 %v1957, %v1957
    %1959 = vmatprep.subr.bf16.mxu0 0
    %1960 = vmatpush1.bf16.msra.mxu0 %v1478
    %1961 = vmatprep.subr.bf16.mxu0 0
    %1962 = vmatpush1.bf16.msra.mxu0 %v1479
    %1963 = vmatprep.subr.bf16.mxu0 0
    %1964 = vmatpush1.bf16.msra.mxu0 %v1480
    %1965 = vmatprep.subr.bf16.mxu0 0
    %1966 = vmatpush1.bf16.msra.mxu0 %v1481
    %1967 = vmatprep.subr.bf16.mxu0 0
    %1968 = vmatpush1.bf16.msra.mxu0 %v1482
    %1969 = vmatprep.subr.bf16.mxu0 0
    %1970 = vmatpush1.bf16.msra.mxu0 %v1483
    %1971 = vmatprep.subr.bf16.mxu0 0
    %1972 = vmatpush1.bf16.msra.mxu0 %v1484
    %1973 = vmatprep.subr.bf16.mxu0 0
    %1974 = vmatpush1.bf16.msra.mxu0 %v1485
    %1975 = vmatprep.subr.bf16.mxu0 0
    %1976 = vmatpush1.bf16.msra.mxu0 0
    %1977 = vmatprep.subr.bf16.mxu0 0
    %1978 = vmatpush1.bf16.msra.mxu0 0
    %1979 = vmatprep.subr.bf16.mxu0 0
    %1980 = vmatpush1.bf16.msra.mxu0 0
    %1981 = vmatprep.subr.bf16.mxu0 0
    %1982 = vmatpush1.bf16.msra.mxu0 0
    %1983 = vmatprep.subr.bf16.mxu0 0
    %1984 = vmatpush1.bf16.msra.mxu0 0
    %1985 = vmatprep.subr.bf16.mxu0 0
    %1986 = vmatpush1.bf16.msra.mxu0 0
    %1987 = vmatprep.subr.bf16.mxu0 0
    %1988 = vmatpush1.bf16.msra.mxu0 0
    %1989 = vmatprep.subr.bf16.mxu0 0
    %1990 = vmatpush1.bf16.msra.mxu0 0
    %1991 = vmatprep.mubr.bf16.mxu0 0
    %1992 = vmatmul.mubr.bf16.gmra.mrb[0].mxu0 %v1958
    %v1993 = vpop.f32.mrb[0].mxu0
    %v1994 = vadd.f32 %v1016, %v1993
    %v1995 = vpop.f32.mrb[0].mxu0
    %v1996 = vpop.f32.mrb[0].mxu0
    %v1997 = vpop.f32.mrb[0].mxu0
    %1998 = vdwg.mxu0
    %s1999 = scalar_lea.vmem [#allocation2], 6
    %2000 = vst [vmem:[%s1999] sm:$0x3] %v1994
    %v2001 = vsel %vm1535, %v1994, -inf
    %2002 = vmax.xlane.f32.xlu0 %v2001
    %v2003 = vpop.xlane.xlu0 %2002
    %vm2004 = vcmp.eq.f32.partialorder %v1994, %v2003
    %v2005 = vsel %vm2004, 1, 0
    %v2006 = vcvt.s32.f32 %v2005
    %v2007 = vpack.c.bf16 %v2006, %v2006
    %2008 = vmax.index.xlane.f32.xlu0 %v2001
    %v2009 = vpop.xlane.xlu0 %2008
    %vm2010 = vcmp.eq.s32.totalorder %v1019, 4
    %v2011 = vsel %vm2010, %v2009, %v1856
    %2012 = vmatprep.subr.bf16.mxu0 %v1217
    %2013 = vmatpush1.bf16.msra.mxu0 %v1216
    %2014 = vmatprep.subr.bf16.mxu0 %v1221
    %2015 = vmatpush1.bf16.msra.mxu0 %v1220
    %2016 = vmatprep.subr.bf16.mxu0 %v1225
    %2017 = vmatpush1.bf16.msra.mxu0 %v1224
    %2018 = vmatprep.subr.bf16.mxu0 %v1229
    %2019 = vmatpush1.bf16.msra.mxu0 %v1228
    %2020 = vmatprep.subr.bf16.mxu0 %v1233
    %2021 = vmatpush1.bf16.msra.mxu0 %v1232
    %2022 = vmatprep.subr.bf16.mxu0 %v1237
    %2023 = vmatpush1.bf16.msra.mxu0 %v1236
    %2024 = vmatprep.subr.bf16.mxu0 %v1241
    %2025 = vmatpush1.bf16.msra.mxu0 %v1240
    %2026 = vmatprep.subr.bf16.mxu0 %v1245
    %2027 = vmatpush1.bf16.msra.mxu0 %v1244
    %2028 = vmatprep.subr.bf16.mxu0 %v1249
    %2029 = vmatpush1.bf16.msra.mxu0 %v1248
    %2030 = vmatprep.subr.bf16.mxu0 %v1253
    %2031 = vmatpush1.bf16.msra.mxu0 %v1252
    %2032 = vmatprep.subr.bf16.mxu0 %v1257
    %2033 = vmatpush1.bf16.msra.mxu0 %v1256
    %2034 = vmatprep.subr.bf16.mxu0 %v1261
    %2035 = vmatpush1.bf16.msra.mxu0 %v1260
    %2036 = vmatprep.subr.bf16.mxu0 %v1265
    %2037 = vmatpush1.bf16.msra.mxu0 %v1264
    %2038 = vmatprep.subr.bf16.mxu0 %v1269
    %2039 = vmatpush1.bf16.msra.mxu0 %v1268
    %2040 = vmatprep.subr.bf16.mxu0 %v1273
    %2041 = vmatpush1.bf16.msra.mxu0 %v1272
    %2042 = vmatprep.subr.bf16.mxu0 %v1277
    %2043 = vmatpush1.bf16.msra.mxu0 %v1276
    %2044 = vmatprep.mubr.bf16.mxu0 %v1958
    %2045 = vmatmul.mubr.bf16.gmra.mrb[0].mxu0 %v2007
    %v2046 = vpop.f32.mrb[0].mxu0
    %v2047 = vadd.f32 0.0, %v2046
    %v2048 = vpop.f32.mrb[0].mxu0
    %v2049 = vadd.f32 0.0, %v2048
    %v2050 = vpop.f32.mrb[0].mxu0
    %v2051 = vpop.f32.mrb[0].mxu0
    %2052 = vdwg.mxu0
    %2053 = vmatprep.subr.bf16.mxu0 %v1219
    %2054 = vmatpush1.bf16.msra.mxu0 %v1218
    %2055 = vmatprep.subr.bf16.mxu0 %v1223
    %2056 = vmatpush1.bf16.msra.mxu0 %v1222
    %2057 = vmatprep.subr.bf16.mxu0 %v1227
    %2058 = vmatpush1.bf16.msra.mxu0 %v1226
    %2059 = vmatprep.subr.bf16.mxu0 %v1231
    %2060 = vmatpush1.bf16.msra.mxu0 %v1230
    %2061 = vmatprep.subr.bf16.mxu0 %v1235
    %2062 = vmatpush1.bf16.msra.mxu0 %v1234
    %2063 = vmatprep.subr.bf16.mxu0 %v1239
    %2064 = vmatpush1.bf16.msra.mxu0 %v1238
    %2065 = vmatprep.subr.bf16.mxu0 %v1243
    %2066 = vmatpush1.bf16.msra.mxu0 %v1242
    %2067 = vmatprep.subr.bf16.mxu0 %v1247
    %2068 = vmatpush1.bf16.msra.mxu0 %v1246
    %2069 = vmatprep.subr.bf16.mxu0 %v1251
    %2070 = vmatpush1.bf16.msra.mxu0 %v1250
    %2071 = vmatprep.subr.bf16.mxu0 %v1255
    %2072 = vmatpush1.bf16.msra.mxu0 %v1254
    %2073 = vmatprep.subr.bf16.mxu0 %v1259
    %2074 = vmatpush1.bf16.msra.mxu0 %v1258
    %2075 = vmatprep.subr.bf16.mxu0 %v1263
    %2076 = vmatpush1.bf16.msra.mxu0 %v1262
    %2077 = vmatprep.subr.bf16.mxu0 %v1267
    %2078 = vmatpush1.bf16.msra.mxu0 %v1266
    %2079 = vmatprep.subr.bf16.mxu0 %v1271
    %2080 = vmatpush1.bf16.msra.mxu0 %v1270
    %2081 = vmatprep.subr.bf16.mxu0 %v1275
    %2082 = vmatpush1.bf16.msra.mxu0 %v1274
    %2083 = vmatprep.subr.bf16.mxu0 %v1279
    %2084 = vmatpush1.bf16.msra.mxu0 %v1278
    %2085 = vmatprep.mubr.bf16.mxu0 %v1958
    %2086 = vmatmul.mubr.bf16.gmra.mrb[0].mxu0 %v2007
    %v2087 = vpop.f32.mrb[0].mxu0
    %v2088 = vadd.f32 0.0, %v2087
    %v2089 = vpop.f32.mrb[0].mxu0
    %v2090 = vadd.f32 0.0, %v2089
    %v2091 = vpop.f32.mrb[0].mxu0
    %v2092 = vpop.f32.mrb[0].mxu0
    %2093 = vdwg.mxu0
    %v2094 = vxor.u32 %v2047, 2147483648
    %v2095 = vxor.u32 %v2049, 2147483648
    %v2096 = vmul.f32 %v2094, 1.442695
    %v2097 = vpow.pop %v2096
    %v2098 = vmul.f32 %v2095, 1.442695
    %v2099 = vpow.pop %v2098
    %v2100 = vadd.f32 %v2097, 1.0
    %v2101 = vadd.f32 %v2099, 1.0
    %v2102 = vrcp.pop %v2100
    %v2103 = vmul.f32 1.0, %v2102
    %v2104 = vrcp.pop %v2101
    %v2105 = vmul.f32 1.0, %v2104
    %v2106 = vmul.f32 %v2103, %v2090
    %v2107 = vadd.f32 %v2088, %v2106
    %v2108 = vtanh.pop %v2107
    %v2109 = vsub.f32 1.0, %v2105
    %v2110 = vmul.f32 %v2109, %v2108
    %v2111 = vmul.f32 %v2105, %v1957
    %v2112 = vadd.f32 %v2110, %v2111
    %v2113 = vpack.c.bf16 %v2112, %v2112
    %2114 = vmatprep.subr.bf16.mxu0 0
    %2115 = vmatpush1.bf16.msra.mxu0 %v1478
    %2116 = vmatprep.subr.bf16.mxu0 0
    %2117 = vmatpush1.bf16.msra.mxu0 %v1479
    %2118 = vmatprep.subr.bf16.mxu0 0
    %2119 = vmatpush1.bf16.msra.mxu0 %v1480
    %2120 = vmatprep.subr.bf16.mxu0 0
    %2121 = vmatpush1.bf16.msra.mxu0 %v1481
    %2122 = vmatprep.subr.bf16.mxu0 0
    %2123 = vmatpush1.bf16.msra.mxu0 %v1482
    %2124 = vmatprep.subr.bf16.mxu0 0
    %2125 = vmatpush1.bf16.msra.mxu0 %v1483
    %2126 = vmatprep.subr.bf16.mxu0 0
    %2127 = vmatpush1.bf16.msra.mxu0 %v1484
    %2128 = vmatprep.subr.bf16.mxu0 0
    %2129 = vmatpush1.bf16.msra.mxu0 %v1485
    %2130 = vmatprep.subr.bf16.mxu0 0
    %2131 = vmatpush1.bf16.msra.mxu0 0
    %2132 = vmatprep.subr.bf16.mxu0 0
    %2133 = vmatpush1.bf16.msra.mxu0 0
    %2134 = vmatprep.subr.bf16.mxu0 0
    %2135 = vmatpush1.bf16.msra.mxu0 0
    %2136 = vmatprep.subr.bf16.mxu0 0
    %2137 = vmatpush1.bf16.msra.mxu0 0
    %2138 = vmatprep.subr.bf16.mxu0 0
    %2139 = vmatpush1.bf16.msra.mxu0 0
    %2140 = vmatprep.subr.bf16.mxu0 0
    %2141 = vmatpush1.bf16.msra.mxu0 0
    %2142 = vmatprep.subr.bf16.mxu0 0
    %2143 = vmatpush1.bf16.msra.mxu0 0
    %2144 = vmatprep.subr.bf16.mxu0 0
    %2145 = vmatpush1.bf16.msra.mxu0 0
    %2146 = vmatprep.mubr.bf16.mxu0 0
    %2147 = vmatmul.mubr.bf16.gmra.mrb[0].mxu0 %v2113
    %v2148 = vpop.f32.mrb[0].mxu0
    %v2149 = vadd.f32 %v1016, %v2148
    %v2150 = vpop.f32.mrb[0].mxu0
    %v2151 = vpop.f32.mrb[0].mxu0
    %v2152 = vpop.f32.mrb[0].mxu0
    %2153 = vdwg.mxu0
    %s2154 = scalar_lea.vmem [#allocation2], 8
    %2155 = vst [vmem:[%s2154] sm:$0x3] %v2149
    %v2156 = vsel %vm1535, %v2149, -inf
    %2157 = vmax.xlane.f32.xlu0 %v2156
    %v2158 = vpop.xlane.xlu0 %2157
    %vm2159 = vcmp.eq.f32.partialorder %v2149, %v2158
    %v2160 = vsel %vm2159, 1, 0
    %v2161 = vcvt.s32.f32 %v2160
    %v2162 = vpack.c.bf16 %v2161, %v2161
    %2163 = vmax.index.xlane.f32.xlu0 %v2156
    %v2164 = vpop.xlane.xlu0 %2163
    %vm2165 = vcmp.eq.s32.totalorder %v1019, 5
    %v2166 = vsel %vm2165, %v2164, %v2011
    %2167 = vmatprep.subr.bf16.mxu0 %v1217
    %2168 = vmatpush1.bf16.msra.mxu0 %v1216
    %2169 = vmatprep.subr.bf16.mxu0 %v1221
    %2170 = vmatpush1.bf16.msra.mxu0 %v1220
    %2171 = vmatprep.subr.bf16.mxu0 %v1225
    %2172 = vmatpush1.bf16.msra.mxu0 %v1224
    %2173 = vmatprep.subr.bf16.mxu0 %v1229
    %2174 = vmatpush1.bf16.msra.mxu0 %v1228
    %2175 = vmatprep.subr.bf16.mxu0 %v1233
    %2176 = vmatpush1.bf16.msra.mxu0 %v1232
    %2177 = vmatprep.subr.bf16.mxu0 %v1237
    %2178 = vmatpush1.bf16.msra.mxu0 %v1236
    %2179 = vmatprep.subr.bf16.mxu0 %v1241
    %2180 = vmatpush1.bf16.msra.mxu0 %v1240
    %2181 = vmatprep.subr.bf16.mxu0 %v1245
    %2182 = vmatpush1.bf16.msra.mxu0 %v1244
    %2183 = vmatprep.subr.bf16.mxu0 %v1249
    %2184 = vmatpush1.bf16.msra.mxu0 %v1248
    %2185 = vmatprep.subr.bf16.mxu0 %v1253
    %2186 = vmatpush1.bf16.msra.mxu0 %v1252
    %2187 = vmatprep.subr.bf16.mxu0 %v1257
    %2188 = vmatpush1.bf16.msra.mxu0 %v1256
    %2189 = vmatprep.subr.bf16.mxu0 %v1261
    %2190 = vmatpush1.bf16.msra.mxu0 %v1260
    %2191 = vmatprep.subr.bf16.mxu0 %v1265
    %2192 = vmatpush1.bf16.msra.mxu0 %v1264
    %2193 = vmatprep.subr.bf16.mxu0 %v1269
    %2194 = vmatpush1.bf16.msra.mxu0 %v1268
    %2195 = vmatprep.subr.bf16.mxu0 %v1273
    %2196 = vmatpush1.bf16.msra.mxu0 %v1272
    %2197 = vmatprep.subr.bf16.mxu0 %v1277
    %2198 = vmatpush1.bf16.msra.mxu0 %v1276
    %2199 = vmatprep.mubr.bf16.mxu0 %v2113
    %2200 = vmatmul.mubr.bf16.gmra.mrb[0].mxu0 %v2162
    %v2201 = vpop.f32.mrb[0].mxu0
    %v2202 = vadd.f32 0.0, %v2201
    %v2203 = vpop.f32.mrb[0].mxu0
    %v2204 = vadd.f32 0.0, %v2203
    %v2205 = vpop.f32.mrb[0].mxu0
    %v2206 = vpop.f32.mrb[0].mxu0
    %2207 = vdwg.mxu0
    %2208 = vmatprep.subr.bf16.mxu0 %v1219
    %2209 = vmatpush1.bf16.msra.mxu0 %v1218
    %2210 = vmatprep.subr.bf16.mxu0 %v1223
    %2211 = vmatpush1.bf16.msra.mxu0 %v1222
    %2212 = vmatprep.subr.bf16.mxu0 %v1227
    %2213 = vmatpush1.bf16.msra.mxu0 %v1226
    %2214 = vmatprep.subr.bf16.mxu0 %v1231
    %2215 = vmatpush1.bf16.msra.mxu0 %v1230
    %2216 = vmatprep.subr.bf16.mxu0 %v1235
    %2217 = vmatpush1.bf16.msra.mxu0 %v1234
    %2218 = vmatprep.subr.bf16.mxu0 %v1239
    %2219 = vmatpush1.bf16.msra.mxu0 %v1238
    %2220 = vmatprep.subr.bf16.mxu0 %v1243
    %2221 = vmatpush1.bf16.msra.mxu0 %v1242
    %2222 = vmatprep.subr.bf16.mxu0 %v1247
    %2223 = vmatpush1.bf16.msra.mxu0 %v1246
    %2224 = vmatprep.subr.bf16.mxu0 %v1251
    %2225 = vmatpush1.bf16.msra.mxu0 %v1250
    %2226 = vmatprep.subr.bf16.mxu0 %v1255
    %2227 = vmatpush1.bf16.msra.mxu0 %v1254
    %2228 = vmatprep.subr.bf16.mxu0 %v1259
    %2229 = vmatpush1.bf16.msra.mxu0 %v1258
    %2230 = vmatprep.subr.bf16.mxu0 %v1263
    %2231 = vmatpush1.bf16.msra.mxu0 %v1262
    %2232 = vmatprep.subr.bf16.mxu0 %v1267
    %2233 = vmatpush1.bf16.msra.mxu0 %v1266
    %2234 = vmatprep.subr.bf16.mxu0 %v1271
    %2235 = vmatpush1.bf16.msra.mxu0 %v1270
    %2236 = vmatprep.subr.bf16.mxu0 %v1275
    %2237 = vmatpush1.bf16.msra.mxu0 %v1274
    %2238 = vmatprep.subr.bf16.mxu0 %v1279
    %2239 = vmatpush1.bf16.msra.mxu0 %v1278
    %2240 = vmatprep.mubr.bf16.mxu0 %v2113
    %2241 = vmatmul.mubr.bf16.gmra.mrb[0].mxu0 %v2162
    %v2242 = vpop.f32.mrb[0].mxu0
    %v2243 = vadd.f32 0.0, %v2242
    %v2244 = vpop.f32.mrb[0].mxu0
    %v2245 = vadd.f32 0.0, %v2244
    %v2246 = vpop.f32.mrb[0].mxu0
    %v2247 = vpop.f32.mrb[0].mxu0
    %2248 = vdwg.mxu0
    %v2249 = vxor.u32 %v2202, 2147483648
    %v2250 = vxor.u32 %v2204, 2147483648
    %v2251 = vmul.f32 %v2249, 1.442695
    %v2252 = vpow.pop %v2251
    %v2253 = vmul.f32 %v2250, 1.442695
    %v2254 = vpow.pop %v2253
    %v2255 = vadd.f32 %v2252, 1.0
    %v2256 = vadd.f32 %v2254, 1.0
    %v2257 = vrcp.pop %v2255
    %v2258 = vmul.f32 1.0, %v2257
    %v2259 = vrcp.pop %v2256
    %v2260 = vmul.f32 1.0, %v2259
    %v2261 = vmul.f32 %v2258, %v2245
    %v2262 = vadd.f32 %v2243, %v2261
    %v2263 = vtanh.pop %v2262
    %v2264 = vsub.f32 1.0, %v2260
    %v2265 = vmul.f32 %v2264, %v2263
    %v2266 = vmul.f32 %v2260, %v2112
    %v2267 = vadd.f32 %v2265, %v2266
    %v2268 = vpack.c.bf16 %v2267, %v2267
    %2269 = vmatprep.subr.bf16.mxu0 0
    %2270 = vmatpush1.bf16.msra.mxu0 %v1478
    %2271 = vmatprep.subr.bf16.mxu0 0
    %2272 = vmatpush1.bf16.msra.mxu0 %v1479
    %2273 = vmatprep.subr.bf16.mxu0 0
    %2274 = vmatpush1.bf16.msra.mxu0 %v1480
    %2275 = vmatprep.subr.bf16.mxu0 0
    %2276 = vmatpush1.bf16.msra.mxu0 %v1481
    %2277 = vmatprep.subr.bf16.mxu0 0
    %2278 = vmatpush1.bf16.msra.mxu0 %v1482
    %2279 = vmatprep.subr.bf16.mxu0 0
    %2280 = vmatpush1.bf16.msra.mxu0 %v1483
    %2281 = vmatprep.subr.bf16.mxu0 0
    %2282 = vmatpush1.bf16.msra.mxu0 %v1484
    %2283 = vmatprep.subr.bf16.mxu0 0
    %2284 = vmatpush1.bf16.msra.mxu0 %v1485
    %2285 = vmatprep.subr.bf16.mxu0 0
    %2286 = vmatpush1.bf16.msra.mxu0 0
    %2287 = vmatprep.subr.bf16.mxu0 0
    %2288 = vmatpush1.bf16.msra.mxu0 0
    %2289 = vmatprep.subr.bf16.mxu0 0
    %2290 = vmatpush1.bf16.msra.mxu0 0
    %2291 = vmatprep.subr.bf16.mxu0 0
    %2292 = vmatpush1.bf16.msra.mxu0 0
    %2293 = vmatprep.subr.bf16.mxu0 0
    %2294 = vmatpush1.bf16.msra.mxu0 0
    %2295 = vmatprep.subr.bf16.mxu0 0
    %2296 = vmatpush1.bf16.msra.mxu0 0
    %2297 = vmatprep.subr.bf16.mxu0 0
    %2298 = vmatpush1.bf16.msra.mxu0 0
    %2299 = vmatprep.subr.bf16.mxu0 0
    %2300 = vmatpush1.bf16.msra.mxu0 0
    %2301 = vmatprep.mubr.bf16.mxu0 0
    %2302 = vmatmul.mubr.bf16.gmra.mrb[0].mxu0 %v2268
    %v2303 = vpop.f32.mrb[0].mxu0
    %v2304 = vadd.f32 %v1016, %v2303
    %v2305 = vpop.f32.mrb[0].mxu0
    %v2306 = vpop.f32.mrb[0].mxu0
    %v2307 = vpop.f32.mrb[0].mxu0
    %2308 = vdwg.mxu0
    %s2309 = scalar_lea.vmem [#allocation2], 10
    %2310 = vst [vmem:[%s2309] sm:$0x3] %v2304
    %v2311 = vsel %vm1535, %v2304, -inf
    %2312 = vmax.xlane.f32.xlu0 %v2311
    %v2313 = vpop.xlane.xlu0 %2312
    %vm2314 = vcmp.eq.f32.partialorder %v2304, %v2313
    %v2315 = vsel %vm2314, 1, 0
    %v2316 = vcvt.s32.f32 %v2315
    %v2317 = vpack.c.bf16 %v2316, %v2316
    %2318 = vmax.index.xlane.f32.xlu0 %v2311
    %v2319 = vpop.xlane.xlu0 %2318
    %vm2320 = vcmp.eq.s32.totalorder %v1019, 6
    %v2321 = vsel %vm2320, %v2319, %v2166
    %2322 = vmatprep.subr.bf16.mxu0 %v1217
    %2323 = vmatpush1.bf16.msra.mxu0 %v1216
    %2324 = vmatprep.subr.bf16.mxu0 %v1221
    %2325 = vmatpush1.bf16.msra.mxu0 %v1220
    %2326 = vmatprep.subr.bf16.mxu0 %v1225
    %2327 = vmatpush1.bf16.msra.mxu0 %v1224
    %2328 = vmatprep.subr.bf16.mxu0 %v1229
    %2329 = vmatpush1.bf16.msra.mxu0 %v1228
    %2330 = vmatprep.subr.bf16.mxu0 %v1233
    %2331 = vmatpush1.bf16.msra.mxu0 %v1232
    %2332 = vmatprep.subr.bf16.mxu0 %v1237
    %2333 = vmatpush1.bf16.msra.mxu0 %v1236
    %2334 = vmatprep.subr.bf16.mxu0 %v1241
    %2335 = vmatpush1.bf16.msra.mxu0 %v1240
    %2336 = vmatprep.subr.bf16.mxu0 %v1245
    %2337 = vmatpush1.bf16.msra.mxu0 %v1244
    %2338 = vmatprep.subr.bf16.mxu0 %v1249
    %2339 = vmatpush1.bf16.msra.mxu0 %v1248
    %2340 = vmatprep.subr.bf16.mxu0 %v1253
    %2341 = vmatpush1.bf16.msra.mxu0 %v1252
    %2342 = vmatprep.subr.bf16.mxu0 %v1257
    %2343 = vmatpush1.bf16.msra.mxu0 %v1256
    %2344 = vmatprep.subr.bf16.mxu0 %v1261
    %2345 = vmatpush1.bf16.msra.mxu0 %v1260
    %2346 = vmatprep.subr.bf16.mxu0 %v1265
    %2347 = vmatpush1.bf16.msra.mxu0 %v1264
    %2348 = vmatprep.subr.bf16.mxu0 %v1269
    %2349 = vmatpush1.bf16.msra.mxu0 %v1268
    %2350 = vmatprep.subr.bf16.mxu0 %v1273
    %2351 = vmatpush1.bf16.msra.mxu0 %v1272
    %2352 = vmatprep.subr.bf16.mxu0 %v1277
    %2353 = vmatpush1.bf16.msra.mxu0 %v1276
    %2354 = vmatprep.mubr.bf16.mxu0 %v2268
    %2355 = vmatmul.mubr.bf16.gmra.mrb[0].mxu0 %v2317
    %v2356 = vpop.f32.mrb[0].mxu0
    %v2357 = vadd.f32 0.0, %v2356
    %v2358 = vpop.f32.mrb[0].mxu0
    %v2359 = vadd.f32 0.0, %v2358
    %v2360 = vpop.f32.mrb[0].mxu0
    %v2361 = vpop.f32.mrb[0].mxu0
    %2362 = vdwg.mxu0
    %2363 = vmatprep.subr.bf16.mxu0 %v1219
    %2364 = vmatpush1.bf16.msra.mxu0 %v1218
    %2365 = vmatprep.subr.bf16.mxu0 %v1223
    %2366 = vmatpush1.bf16.msra.mxu0 %v1222
    %2367 = vmatprep.subr.bf16.mxu0 %v1227
    %2368 = vmatpush1.bf16.msra.mxu0 %v1226
    %2369 = vmatprep.subr.bf16.mxu0 %v1231
    %2370 = vmatpush1.bf16.msra.mxu0 %v1230
    %2371 = vmatprep.subr.bf16.mxu0 %v1235
    %2372 = vmatpush1.bf16.msra.mxu0 %v1234
    %2373 = vmatprep.subr.bf16.mxu0 %v1239
    %2374 = vmatpush1.bf16.msra.mxu0 %v1238
    %2375 = vmatprep.subr.bf16.mxu0 %v1243
    %2376 = vmatpush1.bf16.msra.mxu0 %v1242
    %2377 = vmatprep.subr.bf16.mxu0 %v1247
    %2378 = vmatpush1.bf16.msra.mxu0 %v1246
    %2379 = vmatprep.subr.bf16.mxu0 %v1251
    %2380 = vmatpush1.bf16.msra.mxu0 %v1250
    %2381 = vmatprep.subr.bf16.mxu0 %v1255
    %2382 = vmatpush1.bf16.msra.mxu0 %v1254
    %2383 = vmatprep.subr.bf16.mxu0 %v1259
    %2384 = vmatpush1.bf16.msra.mxu0 %v1258
    %2385 = vmatprep.subr.bf16.mxu0 %v1263
    %2386 = vmatpush1.bf16.msra.mxu0 %v1262
    %2387 = vmatprep.subr.bf16.mxu0 %v1267
    %2388 = vmatpush1.bf16.msra.mxu0 %v1266
    %2389 = vmatprep.subr.bf16.mxu0 %v1271
    %2390 = vmatpush1.bf16.msra.mxu0 %v1270
    %2391 = vmatprep.subr.bf16.mxu0 %v1275
    %2392 = vmatpush1.bf16.msra.mxu0 %v1274
    %2393 = vmatprep.subr.bf16.mxu0 %v1279
    %2394 = vmatpush1.bf16.msra.mxu0 %v1278
    %2395 = vmatprep.mubr.bf16.mxu0 %v2268
    %2396 = vmatmul.mubr.bf16.gmra.mrb[0].mxu0 %v2317
    %v2397 = vpop.f32.mrb[0].mxu0
    %v2398 = vadd.f32 0.0, %v2397
    %v2399 = vpop.f32.mrb[0].mxu0
    %v2400 = vadd.f32 0.0, %v2399
    %v2401 = vpop.f32.mrb[0].mxu0
    %v2402 = vpop.f32.mrb[0].mxu0
    %2403 = vdwg.mxu0
    %v2404 = vxor.u32 %v2357, 2147483648
    %v2405 = vxor.u32 %v2359, 2147483648
    %v2406 = vmul.f32 %v2404, 1.442695
    %v2407 = vpow.pop %v2406
    %v2408 = vmul.f32 %v2405, 1.442695
    %v2409 = vpow.pop %v2408
    %v2410 = vadd.f32 %v2407, 1.0
    %v2411 = vadd.f32 %v2409, 1.0
    %v2412 = vrcp.pop %v2410
    %v2413 = vmul.f32 1.0, %v2412
    %v2414 = vrcp.pop %v2411
    %v2415 = vmul.f32 1.0, %v2414
    %v2416 = vmul.f32 %v2413, %v2400
    %v2417 = vadd.f32 %v2398, %v2416
    %v2418 = vtanh.pop %v2417
    %v2419 = vsub.f32 1.0, %v2415
    %v2420 = vmul.f32 %v2419, %v2418
    %v2421 = vmul.f32 %v2415, %v2267
    %v2422 = vadd.f32 %v2420, %v2421
    %v2423 = vpack.c.bf16 %v2422, %v2422
    %2424 = vmatprep.subr.bf16.mxu0 0
    %2425 = vmatpush1.bf16.msra.mxu0 %v1478
    %2426 = vmatprep.subr.bf16.mxu0 0
    %2427 = vmatpush1.bf16.msra.mxu0 %v1479
    %2428 = vmatprep.subr.bf16.mxu0 0
    %2429 = vmatpush1.bf16.msra.mxu0 %v1480
    %2430 = vmatprep.subr.bf16.mxu0 0
    %2431 = vmatpush1.bf16.msra.mxu0 %v1481
    %2432 = vmatprep.subr.bf16.mxu0 0
    %2433 = vmatpush1.bf16.msra.mxu0 %v1482
    %2434 = vmatprep.subr.bf16.mxu0 0
    %2435 = vmatpush1.bf16.msra.mxu0 %v1483
    %2436 = vmatprep.subr.bf16.mxu0 0
    %2437 = vmatpush1.bf16.msra.mxu0 %v1484
    %2438 = vmatprep.subr.bf16.mxu0 0
    %2439 = vmatpush1.bf16.msra.mxu0 %v1485
    %2440 = vmatprep.subr.bf16.mxu0 0
    %2441 = vmatpush1.bf16.msra.mxu0 0
    %2442 = vmatprep.subr.bf16.mxu0 0
    %2443 = vmatpush1.bf16.msra.mxu0 0
    %2444 = vmatprep.subr.bf16.mxu0 0
    %2445 = vmatpush1.bf16.msra.mxu0 0
    %2446 = vmatprep.subr.bf16.mxu0 0
    %2447 = vmatpush1.bf16.msra.mxu0 0
    %2448 = vmatprep.subr.bf16.mxu0 0
    %2449 = vmatpush1.bf16.msra.mxu0 0
    %2450 = vmatprep.subr.bf16.mxu0 0
    %2451 = vmatpush1.bf16.msra.mxu0 0
    %2452 = vmatprep.subr.bf16.mxu0 0
    %2453 = vmatpush1.bf16.msra.mxu0 0
    %2454 = vmatprep.subr.bf16.mxu0 0
    %2455 = vmatpush1.bf16.msra.mxu0 0
    %2456 = vmatprep.mubr.bf16.mxu0 0
    %2457 = vmatmul.mubr.bf16.gmra.mrb[0].mxu0 %v2423
    %v2458 = vpop.f32.mrb[0].mxu0
    %v2459 = vadd.f32 %v1016, %v2458
    %v2460 = vpop.f32.mrb[0].mxu0
    %v2461 = vpop.f32.mrb[0].mxu0
    %v2462 = vpop.f32.mrb[0].mxu0
    %2463 = vdwg.mxu0
    %s2464 = scalar_lea.vmem [#allocation2], 12
    %2465 = vst [vmem:[%s2464] sm:$0x3] %v2459
    %v2466 = vsel %vm1535, %v2459, -inf
    %2467 = vmax.index.xlane.f32.xlu0 %v2466
    %v2468 = vpop.xlane.xlu0 %2467
    %vm2469 = vcmp.eq.s32.totalorder %v1019, 7
    %v2470 = vsel %vm2469, %v2468, %v2321
    %vm2471 = vcmask 58368
    %2472 = vst.msk [vmem:[#allocation4] sm:$0x3] %vm2471, %v2470
    // Predicated region
    $region38: #{model2_forward.1} parent=1 // pred_check
      _
    $region39: #{model2_forward.1} parent=1 // pred_check_branch
      %2474 = sbr.rel (0) target = $region41
    $region40: #{model2_forward.1} parent=1 // pred_region
      %s2476 = ssub.s32 224, 224
      %2477 = vsyncadd [#allocation3], %s2476
      %s2478 = sshll.u32 [#allocation2], 4
      %s2479 = int_to_ptr.vmem [resolvable:$true] %s2478
      %2484 = dma.vmem_to_hbm [thread:$0]  %s2479, 224, %s9, [#allocation3], 32, 32, 2
    $region41: #{model2_forward.1} parent=1 // pred_fallthru
      _
    // Predicated region
    $region42: #{model2_forward.1} parent=1 // pred_check
      _
    $region43: #{model2_forward.1} parent=1 // pred_check_branch
      %2486 = sbr.rel (0) target = $region45
    $region44: #{model2_forward.1} parent=1 // pred_region
      %s2488 = ssub.s32 32, 32
      %2489 = vsyncadd [#allocation5], %s2488
      %s2491 = sshll.u32 [#allocation4], 4
      %s2492 = int_to_ptr.vmem [resolvable:$true] %s2491
      %2494 = dma.vmem_to_hbm [thread:$0]  %s2492, 32, %s10, [#allocation5]
    $region45: #{model2_forward.1} parent=1 // pred_fallthru
      _
    // Predicated region
    $region46: #{model2_forward.1} parent=1 // pred_check
      _
    $region47: #{model2_forward.1} parent=1 // pred_check_branch
      %2496 = sbr.rel (0) target = $region49
    $region48: #{model2_forward.1} parent=1 // pred_region
      %2497 = dma.done [#allocation3], 224
    $region49: #{model2_forward.1} parent=1 // pred_fallthru
      _
    // Predicated region
    $region50: #{model2_forward.1} parent=1 // pred_check
      _
    $region51: #{model2_forward.1} parent=1 // pred_check_branch
      %2499 = sbr.rel (0) target = $region53
    $region52: #{model2_forward.1} parent=1 // pred_region
      %2500 = dma.done [#allocation5], 32
    $region53: #{model2_forward.1} parent=1 // pred_fallthru
      _
    %2501 = vsyncpa [#allocation3], 1
    %2502 = vsyncpa [#allocation5], 1

</llo_original>
